<compile_context>
chip_gen: v5e
topology: v5e:2x2
jax: 0.10.0
libtpu: 0.0.40
codegen_flags: <defaults>
</compile_context>

<pallas_src>
import jax
import jax.numpy as jnp
from jax import lax
from jax.experimental import pallas as pl
from jax.experimental.pallas import tpu as pltpu


def _round_up(x, m):
    return (x + m - 1) // m * m


def _pick_unroll(tc):
    """Unroll factor for the in-kernel time loop (divisor of tc, modest)."""
    if tc <= 16:
        return max(1, tc)          # fully unroll short chunks
    for u in (8, 4, 2):
        if tc % u == 0:
            return u
    return 1


# ----------------------------------------------------------------------------
# Pallas kernel: one grid step == one (batch chunk, time chunk).
# ----------------------------------------------------------------------------
def _lstm_chunk_kernel(len_ref, x_ref, wx_ref, wh_ref, b_ref, h0_ref, c0_ref,
                       out_ref, hn_ref, cn_ref, h_sc, c_sc, gx_sc):
    t_chunk = pl.program_id(1)                  # time-chunk axis (innermost)
    Tc, Bc, Ip = x_ref.shape                    # static
    Hp = hn_ref.shape[-1]                       # static, multiple of 128

    # (Re)load the initial state at the start of each batch chunk's time sweep.
    @pl.when(t_chunk == 0)
    def _():
        h_sc[...] = h0_ref[...]
        c_sc[...] = c0_ref[...]

    # ---- hoisted per-chunk work --------------------------------------------
    # Input projection for the whole chunk: one large-M MXU matmul with the
    # bias folded in.  (Tc, Bc, Ip) collapses to (Tc*Bc, Ip) for free since
    # Bc is a multiple of 8 and Ip a multiple of 128.
    x_flat = x_ref[...].reshape(Tc * Bc, Ip)
    gx_sc[...] = (jnp.dot(x_flat, wx_ref[...],
                          preferred_element_type=jnp.float32)
                  + b_ref[...])
    w_h = wh_ref[...]                           # (Hp, 4Hp), hoisted
    lengths = len_ref[...]                      # (Bc, 1) int32, hoisted
    t_base = t_chunk * Tc

    # ---- recurrent loop: only h @ W_h on the serial dependency chain --------
    def step(s, carry):
        h, c = carry                            # f32 (Bc, Hp)
        row = pl.multiple_of(s * Bc, Bc)
        gates = gx_sc[pl.ds(row, Bc), :] + jnp.dot(
            h.astype(w_h.dtype), w_h, preferred_element_type=jnp.float32)
        i_g = jax.nn.sigmoid(gates[:, 0 * Hp:1 * Hp])
        f_g = jax.nn.sigmoid(gates[:, 1 * Hp:2 * Hp])
        g_g = jnp.tanh(gates[:, 2 * Hp:3 * Hp])
        o_g = jax.nn.sigmoid(gates[:, 3 * Hp:4 * Hp])
        c_new = f_g * c + i_g * g_g
        h_new = o_g * jnp.tanh(c_new)

        # Length masking: padded steps output 0 and do not advance the state.
        # One (Bc,1) compare + three selects per step.
        valid = (t_base + s) < lengths          # (Bc, 1) bool
        out_ref[s] = jnp.where(valid, h_new, 0.0).astype(out_ref.dtype)
        return (jnp.where(valid, h_new, h), jnp.where(valid, c_new, c))

    h_fin, c_fin = lax.fori_loop(0, Tc, step, (h_sc[...], c_sc[...]),
                                 unroll=_pick_unroll(Tc))
    h_sc[...] = h_fin
    c_sc[...] = c_fin
    # hn/cn block index is constant along the time axis, so these blocks stay
    # VMEM-resident; Pallas flushes them to HBM once per batch chunk.
    hn_ref[...] = h_fin
    cn_ref[...] = c_fin


# ----------------------------------------------------------------------------
# Wrapper: padding, weight layout, pallas_call.
# ----------------------------------------------------------------------------
def lstm_pallas(x_btI, w_ih, w_hh, b_ih, b_hh, lengths=None, init_hidden=None,
                *, compute_dtype=jnp.bfloat16, out_dtype=None,
                time_block=None, batch_block=None):
    """Single-layer LSTM forward, batch_first inputs.

    x_btI: (B, T, I);  w_ih: (4H, I);  w_hh: (4H, H);  b_ih/b_hh: (4H,)
    lengths: optional (B,) int;  init_hidden: optional (h0 (1,B,H), c0 (1,B,H))
    compute_dtype: MXU input dtype for x / weights (state & accum stay f32).
    out_dtype: dtype of the per-step outputs stream (f32 default; bf16 halves
               the dominant HBM writeback on v5e).
    """
    f32 = jnp.float32
    B, T, I = x_btI.shape
    H = w_hh.shape[1]
    out_dtype = f32 if out_dtype is None else out_dtype

    # Lane/sublane padding (8 sublanes, 128 lanes).
    Bp = _round_up(B, 8)
    Hp = _round_up(H, 128)
    Ip = _round_up(I, 128)

    c_sz = jnp.dtype(compute_dtype).itemsize
    o_sz = jnp.dtype(out_dtype).itemsize

    if time_block is None:
        # Size the time chunk to a ~8 MiB per-chunk working set (x block,
        # output block, precomputed-gates scratch) -- comfortably inside
        # v7x's 64 MiB VMEM even with double-buffering; larger Tc amortizes
        # per-grid-step overhead and improves MXU fill of the x-projection.
        per_step = Bp * (Ip * c_sz + Hp * o_sz + 4 * Hp * 4)
        time_block = int(max(8, min(256, (8 << 20) // max(per_step, 1))))
    Tc = max(1, min(time_block, T))
    Tp = _round_up(T, Tc)
    nt = Tp // Tc

    # Batch splitting (v7x megacore) only pays off when each chunk keeps a
    # large M for the recurrent matmul; default is a single batch chunk.
    Bc = Bp if batch_block is None else _round_up(batch_block, 8)
    if Bc <= 0 or Bp % Bc != 0:
        Bc = Bp
    nb = Bp // Bc

    # ---- operands ------------------------------------------------------------
    # jnp.pad (not zeros().at[].set()) so XLA can fuse transpose+cast+pad.
    x_tb = jnp.transpose(x_btI, (1, 0, 2)).astype(compute_dtype)      # (T,B,I)
    x_pad = jnp.pad(x_tb, ((0, Tp - T), (0, Bp - B), (0, Ip - I)))

    if lengths is None:
        lens = jnp.full((B,), T, jnp.int32)
    else:
        lens = jnp.asarray(lengths).astype(jnp.int32)
    lens_pad = jnp.pad(lens, (0, Bp - B)).reshape(Bp, 1)

    if init_hidden is None:
        h0 = jnp.zeros((Bp, Hp), f32)
        c0 = jnp.zeros((Bp, Hp), f32)
    else:
        h0 = jnp.pad(init_hidden[0].reshape(B, H).astype(f32),
                     ((0, Bp - B), (0, Hp - H)))
        c0 = jnp.pad(init_hidden[1].reshape(B, H).astype(f32),
                     ((0, Bp - B), (0, Hp - H)))

    # Gate-padded, transposed weights.  Padded gate columns / bias / state are
    # zero, so padded h/c lanes stay exactly 0 and are sliced off at the end.
    def _gate_pad_T(w):                       # (4H, K) -> (K, 4*Hp)
        K = w.shape[1]
        wt = jnp.transpose(w).reshape(K, 4, H)
        wt = jnp.pad(wt, ((0, 0), (0, 0), (0, Hp - H)))
        return wt.reshape(K, 4 * Hp)

    w_x = jnp.pad(_gate_pad_T(w_ih), ((0, Ip - I), (0, 0))).astype(compute_dtype)
    w_h = jnp.pad(_gate_pad_T(w_hh), ((0, Hp - H), (0, 0))).astype(compute_dtype)
    bias = jnp.pad((b_ih + b_hh).reshape(4, H), ((0, 0), (0, Hp - H)))
    bias = bias.reshape(1, 4 * Hp).astype(f32)
    # TODO(synk): for very large H on v7x (64 MiB VMEM), K-tile / stream w_x
    # (or do the x-projection in a separate pass) instead of keeping both
    # weights fully VMEM-resident.

    # ---- VMEM budget (never below the 32 MiB default) & cost hint -----------
    vmem_needed = (
        2 * Tc * Bc * Ip * c_sz            # x block (double-buffered)
        + 2 * Tc * Bc * Hp * o_sz          # out block (double-buffered)
        + 2 * (Ip + Hp) * 4 * Hp * c_sz    # w_x + w_h (double-buffered)
        + 2 * 4 * Hp * 4                   # bias
        + 4 * 2 * Bc * Hp * 4              # h0/c0 in + hn/cn out
        + 2 * Bc * 128 * 4                 # lengths (lane padded)
        + 2 * Bc * Hp * 4                  # h/c scratch
        + Tc * Bc * 4 * Hp * 4             # gates_x scratch
    )
    vmem_limit = int(max(32 << 20, min(vmem_needed * 3 // 2 + (2 << 20),
                                       100 << 20)))
    cost = pl.CostEstimate(
        flops=int(2 * Tp * Bp * (Ip + Hp) * 4 * Hp),
        transcendentals=int(5 * Tp * Bp * Hp),
        bytes_accessed=int(Tp * Bp * (Ip * c_sz + Hp * o_sz)
                           + (Ip + Hp) * 4 * Hp * c_sz + 4 * Bp * Hp * 4),
    )

    # ---- pallas_call ----------------------------------------------------------
    out_pad, h_n, c_n = pl.pallas_call(
        _lstm_chunk_kernel,
        out_shape=(
            jax.ShapeDtypeStruct((Tp, Bp, Hp), out_dtype),
            jax.ShapeDtypeStruct((Bp, Hp), f32),
            jax.ShapeDtypeStruct((Bp, Hp), f32),
        ),
        grid_spec=pltpu.PrefetchScalarGridSpec(
            num_scalar_prefetch=0,
            grid=(nb, nt),                        # time innermost (sequential)
            in_specs=[
                pl.BlockSpec((Bc, 1), lambda b, t: (b, 0)),            # lengths
                pl.BlockSpec((Tc, Bc, Ip), lambda b, t: (t, b, 0)),    # x chunk
                pl.BlockSpec((Ip, 4 * Hp), lambda b, t: (0, 0)),       # W_x
                pl.BlockSpec((Hp, 4 * Hp), lambda b, t: (0, 0)),       # W_h
                pl.BlockSpec((1, 4 * Hp), lambda b, t: (0, 0)),        # bias
                pl.BlockSpec((Bc, Hp), lambda b, t: (b, 0)),           # h0
                pl.BlockSpec((Bc, Hp), lambda b, t: (b, 0)),           # c0
            ],
            out_specs=[
                pl.BlockSpec((Tc, Bc, Hp), lambda b, t: (t, b, 0)),    # outputs
                pl.BlockSpec((Bc, Hp), lambda b, t: (b, 0)),           # h_n
                pl.BlockSpec((Bc, Hp), lambda b, t: (b, 0)),           # c_n
            ],
            scratch_shapes=[
                pltpu.VMEM((Bc, Hp), jnp.float32),           # h state
                pltpu.VMEM((Bc, Hp), jnp.float32),           # c state
                pltpu.VMEM((Tc * Bc, 4 * Hp), jnp.float32),  # precomputed gates_x
            ],
        ),
        compiler_params=pltpu.CompilerParams(
            # Batch chunks are independent (v7x: shard across both TCs);
            # the time recurrence is inherently sequential.
            dimension_semantics=("parallel", "arbitrary"),
            vmem_limit_bytes=vmem_limit,
        ),
        cost_estimate=cost,
    )(lens_pad, x_pad, w_x, w_h, bias, h0, c0)

    outputs = jnp.transpose(out_pad[:T, :B, :H], (1, 0, 2))           # (B,T,H)
    return outputs, (h_n[:B, :H][None], c_n[:B, :H][None])


def seq_decoder_forward(params, inputs, lengths=None, init_hidden=None, **kw):
    """SeqDecoder.forward in eval mode (dropout = identity)."""
    # TODO(synk): training-mode dropout (stochastic masks) not implemented; eval forward only.
    return lstm_pallas(inputs, params["w_ih"], params["w_hh"],
                       params["b_ih"], params["b_hh"],
                       lengths=lengths, init_hidden=init_hidden, **kw)


# ----------------------------------------------------------------------------
# Pure-JAX reference (lax.scan) used to validate the kernel. `compute_dtype`
# mirrors the kernel's MXU input cast so bf16 runs are compared like-for-like.
# ----------------------------------------------------------------------------
def lstm_reference(x_btI, w_ih, w_hh, b_ih, b_hh, lengths=None,
                   init_hidden=None, compute_dtype=jnp.float32):
    B, T, I = x_btI.shape
    H = w_hh.shape[1]
    f32 = jnp.float32
    x_tbI = jnp.transpose(x_btI, (1, 0, 2)).astype(f32)
    if lengths is None:
        lens = jnp.full((B,), T, jnp.int32)
    else:
        lens = jnp.asarray(lengths).astype(jnp.int32)
    mask = (jnp.arange(T)[:, None] < lens[None, :]).astype(f32)[:, :, None]

    wi = jnp.transpose(w_ih).astype(compute_dtype)   # (I, 4H)
    wh = jnp.transpose(w_hh).astype(compute_dtype)   # (H, 4H)
    b = (b_ih + b_hh).astype(f32)

    if init_hidden is None:
        h0 = jnp.zeros((B, H), f32)
        c0 = jnp.zeros((B, H), f32)
    else:
        h0 = init_hidden[0].reshape(B, H).astype(f32)
        c0 = init_hidden[1].reshape(B, H).astype(f32)

    def step(carry, xm):
        h, c = carry
        xt, m = xm
        gates = (jnp.dot(xt.astype(compute_dtype), wi, preferred_element_type=f32)
                 + jnp.dot(h.astype(compute_dtype), wh, preferred_element_type=f32)
                 + b)
        i_g = jax.nn.sigmoid(gates[:, 0 * H:1 * H])
        f_g = jax.nn.sigmoid(gates[:, 1 * H:2 * H])
        g_g = jnp.tanh(gates[:, 2 * H:3 * H])
        o_g = jax.nn.sigmoid(gates[:, 3 * H:4 * H])
        c_new = f_g * c + i_g * g_g
        h_new = o_g * jnp.tanh(c_new)
        h_u = m * h_new + (1 - m) * h
        c_u = m * c_new + (1 - m) * c
        return (h_u, c_u), m * h_new

    (h_n, c_n), outs = lax.scan(step, (h0, c0), (x_tbI, mask))
    return jnp.transpose(outs, (1, 0, 2)), (h_n[None], c_n[None])


if __name__ == "__main__":
    # Small shapes consistent with the module: batch=2, seq=8, input=16, hidden=32.
    B, T, I, H = 2, 8, 16, 32

    key = jax.random.PRNGKey(0)
    k_x, k1, k2, k3, k4, k5, k6 = jax.random.split(key, 7)
    bound = 1.0 / jnp.sqrt(H)
    params = {
        "w_ih": jax.random.uniform(k1, (4 * H, I), jnp.float32, -bound, bound),
        "w_hh": jax.random.uniform(k2, (4 * H, H), jnp.float32, -bound, bound),
        "b_ih": jax.random.uniform(k3, (4 * H,), jnp.float32, -bound, bound),
        "b_hh": jax.random.uniform(k4, (4 * H,), jnp.float32, -bound, bound),
    }
    x = jax.random.normal(k_x, (B, T, I), jnp.float32)
    lengths = jnp.array([T, 5], jnp.int32)   # descending, as pack() expects

    # --- default path: bf16 MXU inputs, f32 state/accum ------------------------
    outputs, (h_n, c_n) = seq_decoder_forward(params, x, lengths=lengths)
    jax.block_until_ready((outputs, h_n, c_n))

    ref_out, (ref_h, ref_c) = lstm_reference(
        x, params["w_ih"], params["w_hh"], params["b_ih"], params["b_hh"],
        lengths=lengths, compute_dtype=jnp.bfloat16)

    assert outputs.shape == (B, T, H)
    assert h_n.shape == (1, B, H) and c_n.shape == (1, B, H)
    assert jnp.allclose(outputs, ref_out, atol=5e-3, rtol=5e-3)
    assert jnp.allclose(h_n, ref_h, atol=5e-3, rtol=5e-3)
    assert jnp.allclose(c_n, ref_c, atol=5e-3, rtol=5e-3)

    # --- full f32 path (tight tolerance) ---------------------------------------
    out32, (h32, c32) = lstm_pallas(
        x, params["w_ih"], params["w_hh"], params["b_ih"], params["b_hh"],
        lengths=lengths, compute_dtype=jnp.float32)
    ref32, (rh32, rc32) = lstm_reference(
        x, params["w_ih"], params["w_hh"], params["b_ih"], params["b_hh"],
        lengths=lengths, compute_dtype=jnp.float32)
    jax.block_until_ready((out32, h32, c32))
    assert jnp.allclose(out32, ref32, atol=1e-4, rtol=1e-4)
    assert jnp.allclose(h32, rh32, atol=1e-4, rtol=1e-4)
    assert jnp.allclose(c32, rc32, atol=1e-4, rtol=1e-4)

    # --- multi-chunk recurrence + time padding (Tc=3 -> nt=3, Tp=9) ------------
    out_c, (h_c, c_c) = lstm_pallas(
        x, params["w_ih"], params["w_hh"], params["b_ih"], params["b_hh"],
        lengths=lengths, compute_dtype=jnp.float32, time_block=3)
    jax.block_until_ready((out_c, h_c, c_c))
    assert jnp.allclose(out_c, ref32, atol=1e-4, rtol=1e-4)
    assert jnp.allclose(h_c, rh32, atol=1e-4, rtol=1e-4)
    assert jnp.allclose(c_c, rc32, atol=1e-4, rtol=1e-4)

    # --- lengths=None + init_hidden path ----------------------------------------
    h0 = 0.1 * jax.random.normal(k5, (1, B, H), jnp.float32)
    c0 = 0.1 * jax.random.normal(k6, (1, B, H), jnp.float32)
    outN, (hN, cN) = lstm_pallas(
        x, params["w_ih"], params["w_hh"], params["b_ih"], params["b_hh"],
        lengths=None, init_hidden=(h0, c0), compute_dtype=jnp.float32)
    refN, (rhN, rcN) = lstm_reference(
        x, params["w_ih"], params["w_hh"], params["b_ih"], params["b_hh"],
        lengths=None, init_hidden=(h0, c0), compute_dtype=jnp.float32)
    jax.block_until_ready((outN, hN, cN))
    assert jnp.allclose(outN, refN, atol=1e-4, rtol=1e-4)
    assert jnp.allclose(hN, rhN, atol=1e-4, rtol=1e-4)
    assert jnp.allclose(cN, rcN, atol=1e-4, rtol=1e-4)

    print("KERNEL_OK")
</pallas_src>

<mosaic_0001>
module attributes {stable_mosaic.version = 11 : i64} {
  func.func @_lstm_chunk_kernel(%arg0: i32, %arg1: i32, %arg2: memref<8x1xi32, #tpu.memory_space<vmem>>, %arg3: memref<8x8x128xbf16, #tpu.memory_space<vmem>>, %arg4: memref<128x512xbf16, #tpu.memory_space<vmem>>, %arg5: memref<128x512xbf16, #tpu.memory_space<vmem>>, %arg6: memref<1x512xf32, #tpu.memory_space<vmem>>, %arg7: memref<8x128xf32, #tpu.memory_space<vmem>>, %arg8: memref<8x128xf32, #tpu.memory_space<vmem>>, %arg9: memref<8x8x128xf32, #tpu.memory_space<vmem>>, %arg10: memref<8x128xf32, #tpu.memory_space<vmem>>, %arg11: memref<8x128xf32, #tpu.memory_space<vmem>>, %arg12: memref<8x128xf32, #tpu.memory_space<vmem>>, %arg13: memref<8x128xf32, #tpu.memory_space<vmem>>, %arg14: memref<64x512xf32, #tpu.memory_space<vmem>>) attributes {dimension_semantics = [#tpu.dimension_semantics<parallel>, #tpu.dimension_semantics<arbitrary>], iteration_bounds = array<i64: 1, 1>, scalar_prefetch = 0 : i64, scratch_operands = 3 : i64, tpu.core_type = #tpu.core_type<tc>, window_params = [{transform_indices = @transform_0, window_bounds = array<i64: 8, 1>}, {transform_indices = @transform_1, window_bounds = array<i64: 8, 8, 128>}, {pipeline_mode = #tpu.pipeline_mode<synchronous>, transform_indices = @transform_2, window_bounds = array<i64: 128, 512>}, {pipeline_mode = #tpu.pipeline_mode<synchronous>, transform_indices = @transform_3, window_bounds = array<i64: 128, 512>}, {pipeline_mode = #tpu.pipeline_mode<synchronous>, transform_indices = @transform_4, window_bounds = array<i64: 1, 512>}, {transform_indices = @transform_5, window_bounds = array<i64: 8, 128>}, {transform_indices = @transform_6, window_bounds = array<i64: 8, 128>}, {transform_indices = @transform_7, window_bounds = array<i64: 8, 8, 128>}, {transform_indices = @transform_8, window_bounds = array<i64: 8, 128>}, {transform_indices = @transform_9, window_bounds = array<i64: 8, 128>}]} {
    %c0_i32 = arith.constant 0 : i32
    %0 = arith.cmpi eq, %arg1, %c0_i32 : i32
    %1 = arith.extui %0 : i1 to i32
    %c0_i32_0 = arith.constant 0 : i32
    %2 = arith.cmpi ne, %1, %c0_i32_0 : i32
    scf.if %2 {
      %c0_99 = arith.constant 0 : index
      %c0_100 = arith.constant 0 : index
      %412 = vector.load %arg7[%c0_99, %c0_100] : memref<8x128xf32, #tpu.memory_space<vmem>>, vector<8x128xf32>
      %c0_101 = arith.constant 0 : index
      %c0_102 = arith.constant 0 : index
      %413 = vector.load %arg12[%c0_101, %c0_102] : memref<8x128xf32, #tpu.memory_space<vmem>>, vector<8x128xf32>
      tpu.vector_store %arg12[%c0_101, %c0_102], %412 {strides = array<i32>} : memref<8x128xf32, #tpu.memory_space<vmem>>, vector<8x128xf32>,
      %c0_103 = arith.constant 0 : index
      %c0_104 = arith.constant 0 : index
      %414 = vector.load %arg8[%c0_103, %c0_104] : memref<8x128xf32, #tpu.memory_space<vmem>>, vector<8x128xf32>
      %c0_105 = arith.constant 0 : index
      %c0_106 = arith.constant 0 : index
      %415 = vector.load %arg13[%c0_105, %c0_106] : memref<8x128xf32, #tpu.memory_space<vmem>>, vector<8x128xf32>
      tpu.vector_store %arg13[%c0_105, %c0_106], %414 {strides = array<i32>} : memref<8x128xf32, #tpu.memory_space<vmem>>, vector<8x128xf32>,
    } else {
    }
    %c0 = arith.constant 0 : index
    %c0_1 = arith.constant 0 : index
    %c0_2 = arith.constant 0 : index
    %3 = vector.load %arg3[%c0, %c0_1, %c0_2] : memref<8x8x128xbf16, #tpu.memory_space<vmem>>, vector<8x8x128xbf16>
    %4 = vector.shape_cast %3 : vector<8x8x128xbf16> to vector<64x128xbf16>
    %c0_3 = arith.constant 0 : index
    %c0_4 = arith.constant 0 : index
    %5 = vector.load %arg4[%c0_3, %c0_4] : memref<128x512xbf16, #tpu.memory_space<vmem>>, vector<128x512xbf16>
    %cst = arith.constant dense<0.000000e+00> : vector<64x512xf32>
    %6 = tpu.matmul %4, %5, %cst {dimension_numbers = #tpu.dot_dimension_numbers<[1], [0], [0], [1], [0, 0, 1, 1], [], []>} : vector<64x128xbf16>, vector<128x512xbf16>, vector<64x512xf32> -> vector<64x512xf32>
    %c0_5 = arith.constant 0 : index
    %c0_6 = arith.constant 0 : index
    %7 = vector.load %arg6[%c0_5, %c0_6] : memref<1x512xf32, #tpu.memory_space<vmem>>, vector<1x512xf32>
    %8 = vector.broadcast %7 : vector<1x512xf32> to vector<64x512xf32>
    %9 = arith.addf %6, %8 : vector<64x512xf32>
    %c0_7 = arith.constant 0 : index
    %c0_8 = arith.constant 0 : index
    %10 = vector.load %arg14[%c0_7, %c0_8] : memref<64x512xf32, #tpu.memory_space<vmem>>, vector<64x512xf32>
    tpu.vector_store %arg14[%c0_7, %c0_8], %9 {strides = array<i32>} : memref<64x512xf32, #tpu.memory_space<vmem>>, vector<64x512xf32>,
    %c0_9 = arith.constant 0 : index
    %c0_10 = arith.constant 0 : index
    %11 = vector.load %arg5[%c0_9, %c0_10] : memref<128x512xbf16, #tpu.memory_space<vmem>>, vector<128x512xbf16>
    %c0_11 = arith.constant 0 : index
    %c0_12 = arith.constant 0 : index
    %12 = vector.load %arg2[%c0_11, %c0_12] : memref<8x1xi32, #tpu.memory_space<vmem>>, vector<8x1xi32>
    %c8_i32 = arith.constant 8 : i32
    %13 = arith.muli %arg1, %c8_i32 : i32
    %c0_13 = arith.constant 0 : index
    %c0_14 = arith.constant 0 : index
    %14 = vector.load %arg12[%c0_13, %c0_14] : memref<8x128xf32, #tpu.memory_space<vmem>>, vector<8x128xf32>
    %c0_15 = arith.constant 0 : index
    %c0_16 = arith.constant 0 : index
    %15 = vector.load %arg13[%c0_15, %c0_16] : memref<8x128xf32, #tpu.memory_space<vmem>>, vector<8x128xf32>
    %c0_i32_17 = arith.constant 0 : i32
    %c8_i32_18 = arith.constant 8 : i32
    %16 = arith.muli %c0_i32_17, %c8_i32_18 : i32
    %17 = tpu.assume_multiple %16, 8 : i32
    %18 = arith.index_cast %17 : i32 to index
    %c0_19 = arith.constant 0 : index
    %19 = vector.load %arg14[%18, %c0_19] : memref<64x512xf32, #tpu.memory_space<vmem>>, vector<8x512xf32>
    %20 = arith.truncf %14 : vector<8x128xf32> to vector<8x128xbf16>
    %cst_20 = arith.constant dense<0.000000e+00> : vector<8x512xf32>
    %21 = tpu.matmul %20, %11, %cst_20 {dimension_numbers = #tpu.dot_dimension_numbers<[1], [0], [0], [1], [0, 0, 1, 1], [], []>} : vector<8x128xbf16>, vector<128x512xbf16>, vector<8x512xf32> -> vector<8x512xf32>
    %22 = arith.addf %19, %21 : vector<8x512xf32>
    %23 = vector.extract_strided_slice %22 {offsets = [0, 0], sizes = [8, 128], strides = [1, 1]} : vector<8x512xf32> to vector<8x128xf32>
    %24 = arith.negf %23 : vector<8x128xf32>
    %25 = math.exp %24 : vector<8x128xf32>
    %cst_21 = arith.constant 1.000000e+00 : f32
    %26 = vector.broadcast %cst_21 : f32 to vector<8x128xf32>
    %27 = arith.addf %26, %25 : vector<8x128xf32>
    %28 = arith.divf %26, %27 : vector<8x128xf32>
    %29 = vector.extract_strided_slice %22 {offsets = [0, 128], sizes = [8, 128], strides = [1, 1]} : vector<8x512xf32> to vector<8x128xf32>
    %30 = arith.negf %29 : vector<8x128xf32>
    %31 = math.exp %30 : vector<8x128xf32>
    %cst_22 = arith.constant 1.000000e+00 : f32
    %32 = vector.broadcast %cst_22 : f32 to vector<8x128xf32>
    %33 = arith.addf %32, %31 : vector<8x128xf32>
    %34 = arith.divf %32, %33 : vector<8x128xf32>
    %35 = vector.extract_strided_slice %22 {offsets = [0, 256], sizes = [8, 128], strides = [1, 1]} : vector<8x512xf32> to vector<8x128xf32>
    %36 = math.tanh %35 : vector<8x128xf32>
    %37 = vector.extract_strided_slice %22 {offsets = [0, 384], sizes = [8, 128], strides = [1, 1]} : vector<8x512xf32> to vector<8x128xf32>
    %38 = arith.negf %37 : vector<8x128xf32>
    %39 = math.exp %38 : vector<8x128xf32>
    %cst_23 = arith.constant 1.000000e+00 : f32
    %40 = vector.broadcast %cst_23 : f32 to vector<8x128xf32>
    %41 = arith.addf %40, %39 : vector<8x128xf32>
    %42 = arith.divf %40, %41 : vector<8x128xf32>
    %43 = arith.mulf %34, %15 : vector<8x128xf32>
    %44 = arith.mulf %28, %36 : vector<8x128xf32>
    %45 = arith.addf %43, %44 : vector<8x128xf32>
    %46 = math.tanh %45 : vector<8x128xf32>
    %47 = arith.mulf %42, %46 : vector<8x128xf32>
    %48 = arith.addi %13, %c0_i32_17 : i32
    %49 = vector.broadcast %48 : i32 to vector<8x1xi32>
    %50 = arith.cmpi slt, %49, %12 : vector<8x1xi32>
    %cst_24 = arith.constant 0.000000e+00 : f32
    %51 = vector.shape_cast %50 : vector<8x1xi1> to vector<8x1xi1>
    %52 = vector.broadcast %51 : vector<8x1xi1> to vector<8x128xi1>
    %53 = vector.broadcast %cst_24 : f32 to vector<8x128xf32>
    %54 = arith.select %52, %47, %53 : vector<8x128xi1>, vector<8x128xf32>
    %55 = arith.index_cast %c0_i32_17 : i32 to index
    %c0_25 = arith.constant 0 : index
    %c0_26 = arith.constant 0 : index
    %56 = vector.load %arg9[%55, %c0_25, %c0_26] : memref<8x8x128xf32, #tpu.memory_space<vmem>>, vector<1x8x128xf32>
    %57 = vector.shape_cast %56 : vector<1x8x128xf32> to vector<8x128xf32>
    %58 = vector.shape_cast %54 : vector<8x128xf32> to vector<1x8x128xf32>
    tpu.vector_store %arg9[%55, %c0_25, %c0_26], %58 {strides = array<i32>} : memref<8x8x128xf32, #tpu.memory_space<vmem>>, vector<1x8x128xf32>,
    %59 = vector.shape_cast %50 : vector<8x1xi1> to vector<8x1xi1>
    %60 = vector.broadcast %59 : vector<8x1xi1> to vector<8x128xi1>
    %61 = arith.select %60, %47, %14 : vector<8x128xi1>, vector<8x128xf32>
    %62 = vector.shape_cast %50 : vector<8x1xi1> to vector<8x1xi1>
    %63 = vector.broadcast %62 : vector<8x1xi1> to vector<8x128xi1>
    %64 = arith.select %63, %45, %15 : vector<8x128xi1>, vector<8x128xf32>
    %c1_i32 = arith.constant 1 : i32
    %c8_i32_27 = arith.constant 8 : i32
    %65 = arith.muli %c1_i32, %c8_i32_27 : i32
    %66 = tpu.assume_multiple %65, 8 : i32
    %67 = arith.index_cast %66 : i32 to index
    %c0_28 = arith.constant 0 : index
    %68 = vector.load %arg14[%67, %c0_28] : memref<64x512xf32, #tpu.memory_space<vmem>>, vector<8x512xf32>
    %69 = arith.truncf %61 : vector<8x128xf32> to vector<8x128xbf16>
    %cst_29 = arith.constant dense<0.000000e+00> : vector<8x512xf32>
    %70 = tpu.matmul %69, %11, %cst_29 {dimension_numbers = #tpu.dot_dimension_numbers<[1], [0], [0], [1], [0, 0, 1, 1], [], []>} : vector<8x128xbf16>, vector<128x512xbf16>, vector<8x512xf32> -> vector<8x512xf32>
    %71 = arith.addf %68, %70 : vector<8x512xf32>
    %72 = vector.extract_strided_slice %71 {offsets = [0, 0], sizes = [8, 128], strides = [1, 1]} : vector<8x512xf32> to vector<8x128xf32>
    %73 = arith.negf %72 : vector<8x128xf32>
    %74 = math.exp %73 : vector<8x128xf32>
    %cst_30 = arith.constant 1.000000e+00 : f32
    %75 = vector.broadcast %cst_30 : f32 to vector<8x128xf32>
    %76 = arith.addf %75, %74 : vector<8x128xf32>
    %77 = arith.divf %75, %76 : vector<8x128xf32>
    %78 = vector.extract_strided_slice %71 {offsets = [0, 128], sizes = [8, 128], strides = [1, 1]} : vector<8x512xf32> to vector<8x128xf32>
    %79 = arith.negf %78 : vector<8x128xf32>
    %80 = math.exp %79 : vector<8x128xf32>
    %cst_31 = arith.constant 1.000000e+00 : f32
    %81 = vector.broadcast %cst_31 : f32 to vector<8x128xf32>
    %82 = arith.addf %81, %80 : vector<8x128xf32>
    %83 = arith.divf %81, %82 : vector<8x128xf32>
    %84 = vector.extract_strided_slice %71 {offsets = [0, 256], sizes = [8, 128], strides = [1, 1]} : vector<8x512xf32> to vector<8x128xf32>
    %85 = math.tanh %84 : vector<8x128xf32>
    %86 = vector.extract_strided_slice %71 {offsets = [0, 384], sizes = [8, 128], strides = [1, 1]} : vector<8x512xf32> to vector<8x128xf32>
    %87 = arith.negf %86 : vector<8x128xf32>
    %88 = math.exp %87 : vector<8x128xf32>
    %cst_32 = arith.constant 1.000000e+00 : f32
    %89 = vector.broadcast %cst_32 : f32 to vector<8x128xf32>
    %90 = arith.addf %89, %88 : vector<8x128xf32>
    %91 = arith.divf %89, %90 : vector<8x128xf32>
    %92 = arith.mulf %83, %64 : vector<8x128xf32>
    %93 = arith.mulf %77, %85 : vector<8x128xf32>
    %94 = arith.addf %92, %93 : vector<8x128xf32>
    %95 = math.tanh %94 : vector<8x128xf32>
    %96 = arith.mulf %91, %95 : vector<8x128xf32>
    %97 = arith.addi %13, %c1_i32 : i32
    %98 = vector.broadcast %97 : i32 to vector<8x1xi32>
    %99 = arith.cmpi slt, %98, %12 : vector<8x1xi32>
    %cst_33 = arith.constant 0.000000e+00 : f32
    %100 = vector.shape_cast %99 : vector<8x1xi1> to vector<8x1xi1>
    %101 = vector.broadcast %100 : vector<8x1xi1> to vector<8x128xi1>
    %102 = vector.broadcast %cst_33 : f32 to vector<8x128xf32>
    %103 = arith.select %101, %96, %102 : vector<8x128xi1>, vector<8x128xf32>
    %104 = arith.index_cast %c1_i32 : i32 to index
    %c0_34 = arith.constant 0 : index
    %c0_35 = arith.constant 0 : index
    %105 = vector.load %arg9[%104, %c0_34, %c0_35] : memref<8x8x128xf32, #tpu.memory_space<vmem>>, vector<1x8x128xf32>
    %106 = vector.shape_cast %105 : vector<1x8x128xf32> to vector<8x128xf32>
    %107 = vector.shape_cast %103 : vector<8x128xf32> to vector<1x8x128xf32>
    tpu.vector_store %arg9[%104, %c0_34, %c0_35], %107 {strides = array<i32>} : memref<8x8x128xf32, #tpu.memory_space<vmem>>, vector<1x8x128xf32>,
    %108 = vector.shape_cast %99 : vector<8x1xi1> to vector<8x1xi1>
    %109 = vector.broadcast %108 : vector<8x1xi1> to vector<8x128xi1>
    %110 = arith.select %109, %96, %61 : vector<8x128xi1>, vector<8x128xf32>
    %111 = vector.shape_cast %99 : vector<8x1xi1> to vector<8x1xi1>
    %112 = vector.broadcast %111 : vector<8x1xi1> to vector<8x128xi1>
    %113 = arith.select %112, %94, %64 : vector<8x128xi1>, vector<8x128xf32>
    %c2_i32 = arith.constant 2 : i32
    %c8_i32_36 = arith.constant 8 : i32
    %114 = arith.muli %c2_i32, %c8_i32_36 : i32
    %115 = tpu.assume_multiple %114, 8 : i32
    %116 = arith.index_cast %115 : i32 to index
    %c0_37 = arith.constant 0 : index
    %117 = vector.load %arg14[%116, %c0_37] : memref<64x512xf32, #tpu.memory_space<vmem>>, vector<8x512xf32>
    %118 = arith.truncf %110 : vector<8x128xf32> to vector<8x128xbf16>
    %cst_38 = arith.constant dense<0.000000e+00> : vector<8x512xf32>
    %119 = tpu.matmul %118, %11, %cst_38 {dimension_numbers = #tpu.dot_dimension_numbers<[1], [0], [0], [1], [0, 0, 1, 1], [], []>} : vector<8x128xbf16>, vector<128x512xbf16>, vector<8x512xf32> -> vector<8x512xf32>
    %120 = arith.addf %117, %119 : vector<8x512xf32>
    %121 = vector.extract_strided_slice %120 {offsets = [0, 0], sizes = [8, 128], strides = [1, 1]} : vector<8x512xf32> to vector<8x128xf32>
    %122 = arith.negf %121 : vector<8x128xf32>
    %123 = math.exp %122 : vector<8x128xf32>
    %cst_39 = arith.constant 1.000000e+00 : f32
    %124 = vector.broadcast %cst_39 : f32 to vector<8x128xf32>
    %125 = arith.addf %124, %123 : vector<8x128xf32>
    %126 = arith.divf %124, %125 : vector<8x128xf32>
    %127 = vector.extract_strided_slice %120 {offsets = [0, 128], sizes = [8, 128], strides = [1, 1]} : vector<8x512xf32> to vector<8x128xf32>
    %128 = arith.negf %127 : vector<8x128xf32>
    %129 = math.exp %128 : vector<8x128xf32>
    %cst_40 = arith.constant 1.000000e+00 : f32
    %130 = vector.broadcast %cst_40 : f32 to vector<8x128xf32>
    %131 = arith.addf %130, %129 : vector<8x128xf32>
    %132 = arith.divf %130, %131 : vector<8x128xf32>
    %133 = vector.extract_strided_slice %120 {offsets = [0, 256], sizes = [8, 128], strides = [1, 1]} : vector<8x512xf32> to vector<8x128xf32>
    %134 = math.tanh %133 : vector<8x128xf32>
    %135 = vector.extract_strided_slice %120 {offsets = [0, 384], sizes = [8, 128], strides = [1, 1]} : vector<8x512xf32> to vector<8x128xf32>
    %136 = arith.negf %135 : vector<8x128xf32>
    %137 = math.exp %136 : vector<8x128xf32>
    %cst_41 = arith.constant 1.000000e+00 : f32
    %138 = vector.broadcast %cst_41 : f32 to vector<8x128xf32>
    %139 = arith.addf %138, %137 : vector<8x128xf32>
    %140 = arith.divf %138, %139 : vector<8x128xf32>
    %141 = arith.mulf %132, %113 : vector<8x128xf32>
    %142 = arith.mulf %126, %134 : vector<8x128xf32>
    %143 = arith.addf %141, %142 : vector<8x128xf32>
    %144 = math.tanh %143 : vector<8x128xf32>
    %145 = arith.mulf %140, %144 : vector<8x128xf32>
    %146 = arith.addi %13, %c2_i32 : i32
    %147 = vector.broadcast %146 : i32 to vector<8x1xi32>
    %148 = arith.cmpi slt, %147, %12 : vector<8x1xi32>
    %cst_42 = arith.constant 0.000000e+00 : f32
    %149 = vector.shape_cast %148 : vector<8x1xi1> to vector<8x1xi1>
    %150 = vector.broadcast %149 : vector<8x1xi1> to vector<8x128xi1>
    %151 = vector.broadcast %cst_42 : f32 to vector<8x128xf32>
    %152 = arith.select %150, %145, %151 : vector<8x128xi1>, vector<8x128xf32>
    %153 = arith.index_cast %c2_i32 : i32 to index
    %c0_43 = arith.constant 0 : index
    %c0_44 = arith.constant 0 : index
    %154 = vector.load %arg9[%153, %c0_43, %c0_44] : memref<8x8x128xf32, #tpu.memory_space<vmem>>, vector<1x8x128xf32>
    %155 = vector.shape_cast %154 : vector<1x8x128xf32> to vector<8x128xf32>
    %156 = vector.shape_cast %152 : vector<8x128xf32> to vector<1x8x128xf32>
    tpu.vector_store %arg9[%153, %c0_43, %c0_44], %156 {strides = array<i32>} : memref<8x8x128xf32, #tpu.memory_space<vmem>>, vector<1x8x128xf32>,
    %157 = vector.shape_cast %148 : vector<8x1xi1> to vector<8x1xi1>
    %158 = vector.broadcast %157 : vector<8x1xi1> to vector<8x128xi1>
    %159 = arith.select %158, %145, %110 : vector<8x128xi1>, vector<8x128xf32>
    %160 = vector.shape_cast %148 : vector<8x1xi1> to vector<8x1xi1>
    %161 = vector.broadcast %160 : vector<8x1xi1> to vector<8x128xi1>
    %162 = arith.select %161, %143, %113 : vector<8x128xi1>, vector<8x128xf32>
    %c3_i32 = arith.constant 3 : i32
    %c8_i32_45 = arith.constant 8 : i32
    %163 = arith.muli %c3_i32, %c8_i32_45 : i32
    %164 = tpu.assume_multiple %163, 8 : i32
    %165 = arith.index_cast %164 : i32 to index
    %c0_46 = arith.constant 0 : index
    %166 = vector.load %arg14[%165, %c0_46] : memref<64x512xf32, #tpu.memory_space<vmem>>, vector<8x512xf32>
    %167 = arith.truncf %159 : vector<8x128xf32> to vector<8x128xbf16>
    %cst_47 = arith.constant dense<0.000000e+00> : vector<8x512xf32>
    %168 = tpu.matmul %167, %11, %cst_47 {dimension_numbers = #tpu.dot_dimension_numbers<[1], [0], [0], [1], [0, 0, 1, 1], [], []>} : vector<8x128xbf16>, vector<128x512xbf16>, vector<8x512xf32> -> vector<8x512xf32>
    %169 = arith.addf %166, %168 : vector<8x512xf32>
    %170 = vector.extract_strided_slice %169 {offsets = [0, 0], sizes = [8, 128], strides = [1, 1]} : vector<8x512xf32> to vector<8x128xf32>
    %171 = arith.negf %170 : vector<8x128xf32>
    %172 = math.exp %171 : vector<8x128xf32>
    %cst_48 = arith.constant 1.000000e+00 : f32
    %173 = vector.broadcast %cst_48 : f32 to vector<8x128xf32>
    %174 = arith.addf %173, %172 : vector<8x128xf32>
    %175 = arith.divf %173, %174 : vector<8x128xf32>
    %176 = vector.extract_strided_slice %169 {offsets = [0, 128], sizes = [8, 128], strides = [1, 1]} : vector<8x512xf32> to vector<8x128xf32>
    %177 = arith.negf %176 : vector<8x128xf32>
    %178 = math.exp %177 : vector<8x128xf32>
    %cst_49 = arith.constant 1.000000e+00 : f32
    %179 = vector.broadcast %cst_49 : f32 to vector<8x128xf32>
    %180 = arith.addf %179, %178 : vector<8x128xf32>
    %181 = arith.divf %179, %180 : vector<8x128xf32>
    %182 = vector.extract_strided_slice %169 {offsets = [0, 256], sizes = [8, 128], strides = [1, 1]} : vector<8x512xf32> to vector<8x128xf32>
    %183 = math.tanh %182 : vector<8x128xf32>
    %184 = vector.extract_strided_slice %169 {offsets = [0, 384], sizes = [8, 128], strides = [1, 1]} : vector<8x512xf32> to vector<8x128xf32>
    %185 = arith.negf %184 : vector<8x128xf32>
    %186 = math.exp %185 : vector<8x128xf32>
    %cst_50 = arith.constant 1.000000e+00 : f32
    %187 = vector.broadcast %cst_50 : f32 to vector<8x128xf32>
    %188 = arith.addf %187, %186 : vector<8x128xf32>
    %189 = arith.divf %187, %188 : vector<8x128xf32>
    %190 = arith.mulf %181, %162 : vector<8x128xf32>
    %191 = arith.mulf %175, %183 : vector<8x128xf32>
    %192 = arith.addf %190, %191 : vector<8x128xf32>
    %193 = math.tanh %192 : vector<8x128xf32>
    %194 = arith.mulf %189, %193 : vector<8x128xf32>
    %195 = arith.addi %13, %c3_i32 : i32
    %196 = vector.broadcast %195 : i32 to vector<8x1xi32>
    %197 = arith.cmpi slt, %196, %12 : vector<8x1xi32>
    %cst_51 = arith.constant 0.000000e+00 : f32
    %198 = vector.shape_cast %197 : vector<8x1xi1> to vector<8x1xi1>
    %199 = vector.broadcast %198 : vector<8x1xi1> to vector<8x128xi1>
    %200 = vector.broadcast %cst_51 : f32 to vector<8x128xf32>
    %201 = arith.select %199, %194, %200 : vector<8x128xi1>, vector<8x128xf32>
    %202 = arith.index_cast %c3_i32 : i32 to index
    %c0_52 = arith.constant 0 : index
    %c0_53 = arith.constant 0 : index
    %203 = vector.load %arg9[%202, %c0_52, %c0_53] : memref<8x8x128xf32, #tpu.memory_space<vmem>>, vector<1x8x128xf32>
    %204 = vector.shape_cast %203 : vector<1x8x128xf32> to vector<8x128xf32>
    %205 = vector.shape_cast %201 : vector<8x128xf32> to vector<1x8x128xf32>
    tpu.vector_store %arg9[%202, %c0_52, %c0_53], %205 {strides = array<i32>} : memref<8x8x128xf32, #tpu.memory_space<vmem>>, vector<1x8x128xf32>,
    %206 = vector.shape_cast %197 : vector<8x1xi1> to vector<8x1xi1>
    %207 = vector.broadcast %206 : vector<8x1xi1> to vector<8x128xi1>
    %208 = arith.select %207, %194, %159 : vector<8x128xi1>, vector<8x128xf32>
    %209 = vector.shape_cast %197 : vector<8x1xi1> to vector<8x1xi1>
    %210 = vector.broadcast %209 : vector<8x1xi1> to vector<8x128xi1>
    %211 = arith.select %210, %192, %162 : vector<8x128xi1>, vector<8x128xf32>
    %c4_i32 = arith.constant 4 : i32
    %c8_i32_54 = arith.constant 8 : i32
    %212 = arith.muli %c4_i32, %c8_i32_54 : i32
    %213 = tpu.assume_multiple %212, 8 : i32
    %214 = arith.index_cast %213 : i32 to index
    %c0_55 = arith.constant 0 : index
    %215 = vector.load %arg14[%214, %c0_55] : memref<64x512xf32, #tpu.memory_space<vmem>>, vector<8x512xf32>
    %216 = arith.truncf %208 : vector<8x128xf32> to vector<8x128xbf16>
    %cst_56 = arith.constant dense<0.000000e+00> : vector<8x512xf32>
    %217 = tpu.matmul %216, %11, %cst_56 {dimension_numbers = #tpu.dot_dimension_numbers<[1], [0], [0], [1], [0, 0, 1, 1], [], []>} : vector<8x128xbf16>, vector<128x512xbf16>, vector<8x512xf32> -> vector<8x512xf32>
    %218 = arith.addf %215, %217 : vector<8x512xf32>
    %219 = vector.extract_strided_slice %218 {offsets = [0, 0], sizes = [8, 128], strides = [1, 1]} : vector<8x512xf32> to vector<8x128xf32>
    %220 = arith.negf %219 : vector<8x128xf32>
    %221 = math.exp %220 : vector<8x128xf32>
    %cst_57 = arith.constant 1.000000e+00 : f32
    %222 = vector.broadcast %cst_57 : f32 to vector<8x128xf32>
    %223 = arith.addf %222, %221 : vector<8x128xf32>
    %224 = arith.divf %222, %223 : vector<8x128xf32>
    %225 = vector.extract_strided_slice %218 {offsets = [0, 128], sizes = [8, 128], strides = [1, 1]} : vector<8x512xf32> to vector<8x128xf32>
    %226 = arith.negf %225 : vector<8x128xf32>
    %227 = math.exp %226 : vector<8x128xf32>
    %cst_58 = arith.constant 1.000000e+00 : f32
    %228 = vector.broadcast %cst_58 : f32 to vector<8x128xf32>
    %229 = arith.addf %228, %227 : vector<8x128xf32>
    %230 = arith.divf %228, %229 : vector<8x128xf32>
    %231 = vector.extract_strided_slice %218 {offsets = [0, 256], sizes = [8, 128], strides = [1, 1]} : vector<8x512xf32> to vector<8x128xf32>
    %232 = math.tanh %231 : vector<8x128xf32>
    %233 = vector.extract_strided_slice %218 {offsets = [0, 384], sizes = [8, 128], strides = [1, 1]} : vector<8x512xf32> to vector<8x128xf32>
    %234 = arith.negf %233 : vector<8x128xf32>
    %235 = math.exp %234 : vector<8x128xf32>
    %cst_59 = arith.constant 1.000000e+00 : f32
    %236 = vector.broadcast %cst_59 : f32 to vector<8x128xf32>
    %237 = arith.addf %236, %235 : vector<8x128xf32>
    %238 = arith.divf %236, %237 : vector<8x128xf32>
    %239 = arith.mulf %230, %211 : vector<8x128xf32>
    %240 = arith.mulf %224, %232 : vector<8x128xf32>
    %241 = arith.addf %239, %240 : vector<8x128xf32>
    %242 = math.tanh %241 : vector<8x128xf32>
    %243 = arith.mulf %238, %242 : vector<8x128xf32>
    %244 = arith.addi %13, %c4_i32 : i32
    %245 = vector.broadcast %244 : i32 to vector<8x1xi32>
    %246 = arith.cmpi slt, %245, %12 : vector<8x1xi32>
    %cst_60 = arith.constant 0.000000e+00 : f32
    %247 = vector.shape_cast %246 : vector<8x1xi1> to vector<8x1xi1>
    %248 = vector.broadcast %247 : vector<8x1xi1> to vector<8x128xi1>
    %249 = vector.broadcast %cst_60 : f32 to vector<8x128xf32>
    %250 = arith.select %248, %243, %249 : vector<8x128xi1>, vector<8x128xf32>
    %251 = arith.index_cast %c4_i32 : i32 to index
    %c0_61 = arith.constant 0 : index
    %c0_62 = arith.constant 0 : index
    %252 = vector.load %arg9[%251, %c0_61, %c0_62] : memref<8x8x128xf32, #tpu.memory_space<vmem>>, vector<1x8x128xf32>
    %253 = vector.shape_cast %252 : vector<1x8x128xf32> to vector<8x128xf32>
    %254 = vector.shape_cast %250 : vector<8x128xf32> to vector<1x8x128xf32>
    tpu.vector_store %arg9[%251, %c0_61, %c0_62], %254 {strides = array<i32>} : memref<8x8x128xf32, #tpu.memory_space<vmem>>, vector<1x8x128xf32>,
    %255 = vector.shape_cast %246 : vector<8x1xi1> to vector<8x1xi1>
    %256 = vector.broadcast %255 : vector<8x1xi1> to vector<8x128xi1>
    %257 = arith.select %256, %243, %208 : vector<8x128xi1>, vector<8x128xf32>
    %258 = vector.shape_cast %246 : vector<8x1xi1> to vector<8x1xi1>
    %259 = vector.broadcast %258 : vector<8x1xi1> to vector<8x128xi1>
    %260 = arith.select %259, %241, %211 : vector<8x128xi1>, vector<8x128xf32>
    %c5_i32 = arith.constant 5 : i32
    %c8_i32_63 = arith.constant 8 : i32
    %261 = arith.muli %c5_i32, %c8_i32_63 : i32
    %262 = tpu.assume_multiple %261, 8 : i32
    %263 = arith.index_cast %262 : i32 to index
    %c0_64 = arith.constant 0 : index
    %264 = vector.load %arg14[%263, %c0_64] : memref<64x512xf32, #tpu.memory_space<vmem>>, vector<8x512xf32>
    %265 = arith.truncf %257 : vector<8x128xf32> to vector<8x128xbf16>
    %cst_65 = arith.constant dense<0.000000e+00> : vector<8x512xf32>
    %266 = tpu.matmul %265, %11, %cst_65 {dimension_numbers = #tpu.dot_dimension_numbers<[1], [0], [0], [1], [0, 0, 1, 1], [], []>} : vector<8x128xbf16>, vector<128x512xbf16>, vector<8x512xf32> -> vector<8x512xf32>
    %267 = arith.addf %264, %266 : vector<8x512xf32>
    %268 = vector.extract_strided_slice %267 {offsets = [0, 0], sizes = [8, 128], strides = [1, 1]} : vector<8x512xf32> to vector<8x128xf32>
    %269 = arith.negf %268 : vector<8x128xf32>
    %270 = math.exp %269 : vector<8x128xf32>
    %cst_66 = arith.constant 1.000000e+00 : f32
    %271 = vector.broadcast %cst_66 : f32 to vector<8x128xf32>
    %272 = arith.addf %271, %270 : vector<8x128xf32>
    %273 = arith.divf %271, %272 : vector<8x128xf32>
    %274 = vector.extract_strided_slice %267 {offsets = [0, 128], sizes = [8, 128], strides = [1, 1]} : vector<8x512xf32> to vector<8x128xf32>
    %275 = arith.negf %274 : vector<8x128xf32>
    %276 = math.exp %275 : vector<8x128xf32>
    %cst_67 = arith.constant 1.000000e+00 : f32
    %277 = vector.broadcast %cst_67 : f32 to vector<8x128xf32>
    %278 = arith.addf %277, %276 : vector<8x128xf32>
    %279 = arith.divf %277, %278 : vector<8x128xf32>
    %280 = vector.extract_strided_slice %267 {offsets = [0, 256], sizes = [8, 128], strides = [1, 1]} : vector<8x512xf32> to vector<8x128xf32>
    %281 = math.tanh %280 : vector<8x128xf32>
    %282 = vector.extract_strided_slice %267 {offsets = [0, 384], sizes = [8, 128], strides = [1, 1]} : vector<8x512xf32> to vector<8x128xf32>
    %283 = arith.negf %282 : vector<8x128xf32>
    %284 = math.exp %283 : vector<8x128xf32>
    %cst_68 = arith.constant 1.000000e+00 : f32
    %285 = vector.broadcast %cst_68 : f32 to vector<8x128xf32>
    %286 = arith.addf %285, %284 : vector<8x128xf32>
    %287 = arith.divf %285, %286 : vector<8x128xf32>
    %288 = arith.mulf %279, %260 : vector<8x128xf32>
    %289 = arith.mulf %273, %281 : vector<8x128xf32>
    %290 = arith.addf %288, %289 : vector<8x128xf32>
    %291 = math.tanh %290 : vector<8x128xf32>
    %292 = arith.mulf %287, %291 : vector<8x128xf32>
    %293 = arith.addi %13, %c5_i32 : i32
    %294 = vector.broadcast %293 : i32 to vector<8x1xi32>
    %295 = arith.cmpi slt, %294, %12 : vector<8x1xi32>
    %cst_69 = arith.constant 0.000000e+00 : f32
    %296 = vector.shape_cast %295 : vector<8x1xi1> to vector<8x1xi1>
    %297 = vector.broadcast %296 : vector<8x1xi1> to vector<8x128xi1>
    %298 = vector.broadcast %cst_69 : f32 to vector<8x128xf32>
    %299 = arith.select %297, %292, %298 : vector<8x128xi1>, vector<8x128xf32>
    %300 = arith.index_cast %c5_i32 : i32 to index
    %c0_70 = arith.constant 0 : index
    %c0_71 = arith.constant 0 : index
    %301 = vector.load %arg9[%300, %c0_70, %c0_71] : memref<8x8x128xf32, #tpu.memory_space<vmem>>, vector<1x8x128xf32>
    %302 = vector.shape_cast %301 : vector<1x8x128xf32> to vector<8x128xf32>
    %303 = vector.shape_cast %299 : vector<8x128xf32> to vector<1x8x128xf32>
    tpu.vector_store %arg9[%300, %c0_70, %c0_71], %303 {strides = array<i32>} : memref<8x8x128xf32, #tpu.memory_space<vmem>>, vector<1x8x128xf32>,
    %304 = vector.shape_cast %295 : vector<8x1xi1> to vector<8x1xi1>
    %305 = vector.broadcast %304 : vector<8x1xi1> to vector<8x128xi1>
    %306 = arith.select %305, %292, %257 : vector<8x128xi1>, vector<8x128xf32>
    %307 = vector.shape_cast %295 : vector<8x1xi1> to vector<8x1xi1>
    %308 = vector.broadcast %307 : vector<8x1xi1> to vector<8x128xi1>
    %309 = arith.select %308, %290, %260 : vector<8x128xi1>, vector<8x128xf32>
    %c6_i32 = arith.constant 6 : i32
    %c8_i32_72 = arith.constant 8 : i32
    %310 = arith.muli %c6_i32, %c8_i32_72 : i32
    %311 = tpu.assume_multiple %310, 8 : i32
    %312 = arith.index_cast %311 : i32 to index
    %c0_73 = arith.constant 0 : index
    %313 = vector.load %arg14[%312, %c0_73] : memref<64x512xf32, #tpu.memory_space<vmem>>, vector<8x512xf32>
    %314 = arith.truncf %306 : vector<8x128xf32> to vector<8x128xbf16>
    %cst_74 = arith.constant dense<0.000000e+00> : vector<8x512xf32>
    %315 = tpu.matmul %314, %11, %cst_74 {dimension_numbers = #tpu.dot_dimension_numbers<[1], [0], [0], [1], [0, 0, 1, 1], [], []>} : vector<8x128xbf16>, vector<128x512xbf16>, vector<8x512xf32> -> vector<8x512xf32>
    %316 = arith.addf %313, %315 : vector<8x512xf32>
    %317 = vector.extract_strided_slice %316 {offsets = [0, 0], sizes = [8, 128], strides = [1, 1]} : vector<8x512xf32> to vector<8x128xf32>
    %318 = arith.negf %317 : vector<8x128xf32>
    %319 = math.exp %318 : vector<8x128xf32>
    %cst_75 = arith.constant 1.000000e+00 : f32
    %320 = vector.broadcast %cst_75 : f32 to vector<8x128xf32>
    %321 = arith.addf %320, %319 : vector<8x128xf32>
    %322 = arith.divf %320, %321 : vector<8x128xf32>
    %323 = vector.extract_strided_slice %316 {offsets = [0, 128], sizes = [8, 128], strides = [1, 1]} : vector<8x512xf32> to vector<8x128xf32>
    %324 = arith.negf %323 : vector<8x128xf32>
    %325 = math.exp %324 : vector<8x128xf32>
    %cst_76 = arith.constant 1.000000e+00 : f32
    %326 = vector.broadcast %cst_76 : f32 to vector<8x128xf32>
    %327 = arith.addf %326, %325 : vector<8x128xf32>
    %328 = arith.divf %326, %327 : vector<8x128xf32>
    %329 = vector.extract_strided_slice %316 {offsets = [0, 256], sizes = [8, 128], strides = [1, 1]} : vector<8x512xf32> to vector<8x128xf32>
    %330 = math.tanh %329 : vector<8x128xf32>
    %331 = vector.extract_strided_slice %316 {offsets = [0, 384], sizes = [8, 128], strides = [1, 1]} : vector<8x512xf32> to vector<8x128xf32>
    %332 = arith.negf %331 : vector<8x128xf32>
    %333 = math.exp %332 : vector<8x128xf32>
    %cst_77 = arith.constant 1.000000e+00 : f32
    %334 = vector.broadcast %cst_77 : f32 to vector<8x128xf32>
    %335 = arith.addf %334, %333 : vector<8x128xf32>
    %336 = arith.divf %334, %335 : vector<8x128xf32>
    %337 = arith.mulf %328, %309 : vector<8x128xf32>
    %338 = arith.mulf %322, %330 : vector<8x128xf32>
    %339 = arith.addf %337, %338 : vector<8x128xf32>
    %340 = math.tanh %339 : vector<8x128xf32>
    %341 = arith.mulf %336, %340 : vector<8x128xf32>
    %342 = arith.addi %13, %c6_i32 : i32
    %343 = vector.broadcast %342 : i32 to vector<8x1xi32>
    %344 = arith.cmpi slt, %343, %12 : vector<8x1xi32>
    %cst_78 = arith.constant 0.000000e+00 : f32
    %345 = vector.shape_cast %344 : vector<8x1xi1> to vector<8x1xi1>
    %346 = vector.broadcast %345 : vector<8x1xi1> to vector<8x128xi1>
    %347 = vector.broadcast %cst_78 : f32 to vector<8x128xf32>
    %348 = arith.select %346, %341, %347 : vector<8x128xi1>, vector<8x128xf32>
    %349 = arith.index_cast %c6_i32 : i32 to index
    %c0_79 = arith.constant 0 : index
    %c0_80 = arith.constant 0 : index
    %350 = vector.load %arg9[%349, %c0_79, %c0_80] : memref<8x8x128xf32, #tpu.memory_space<vmem>>, vector<1x8x128xf32>
    %351 = vector.shape_cast %350 : vector<1x8x128xf32> to vector<8x128xf32>
    %352 = vector.shape_cast %348 : vector<8x128xf32> to vector<1x8x128xf32>
    tpu.vector_store %arg9[%349, %c0_79, %c0_80], %352 {strides = array<i32>} : memref<8x8x128xf32, #tpu.memory_space<vmem>>, vector<1x8x128xf32>,
    %353 = vector.shape_cast %344 : vector<8x1xi1> to vector<8x1xi1>
    %354 = vector.broadcast %353 : vector<8x1xi1> to vector<8x128xi1>
    %355 = arith.select %354, %341, %306 : vector<8x128xi1>, vector<8x128xf32>
    %356 = vector.shape_cast %344 : vector<8x1xi1> to vector<8x1xi1>
    %357 = vector.broadcast %356 : vector<8x1xi1> to vector<8x128xi1>
    %358 = arith.select %357, %339, %309 : vector<8x128xi1>, vector<8x128xf32>
    %c7_i32 = arith.constant 7 : i32
    %c8_i32_81 = arith.constant 8 : i32
    %359 = arith.muli %c7_i32, %c8_i32_81 : i32
    %360 = tpu.assume_multiple %359, 8 : i32
    %361 = arith.index_cast %360 : i32 to index
    %c0_82 = arith.constant 0 : index
    %362 = vector.load %arg14[%361, %c0_82] : memref<64x512xf32, #tpu.memory_space<vmem>>, vector<8x512xf32>
    %363 = arith.truncf %355 : vector<8x128xf32> to vector<8x128xbf16>
    %cst_83 = arith.constant dense<0.000000e+00> : vector<8x512xf32>
    %364 = tpu.matmul %363, %11, %cst_83 {dimension_numbers = #tpu.dot_dimension_numbers<[1], [0], [0], [1], [0, 0, 1, 1], [], []>} : vector<8x128xbf16>, vector<128x512xbf16>, vector<8x512xf32> -> vector<8x512xf32>
    %365 = arith.addf %362, %364 : vector<8x512xf32>
    %366 = vector.extract_strided_slice %365 {offsets = [0, 0], sizes = [8, 128], strides = [1, 1]} : vector<8x512xf32> to vector<8x128xf32>
    %367 = arith.negf %366 : vector<8x128xf32>
    %368 = math.exp %367 : vector<8x128xf32>
    %cst_84 = arith.constant 1.000000e+00 : f32
    %369 = vector.broadcast %cst_84 : f32 to vector<8x128xf32>
    %370 = arith.addf %369, %368 : vector<8x128xf32>
    %371 = arith.divf %369, %370 : vector<8x128xf32>
    %372 = vector.extract_strided_slice %365 {offsets = [0, 128], sizes = [8, 128], strides = [1, 1]} : vector<8x512xf32> to vector<8x128xf32>
    %373 = arith.negf %372 : vector<8x128xf32>
    %374 = math.exp %373 : vector<8x128xf32>
    %cst_85 = arith.constant 1.000000e+00 : f32
    %375 = vector.broadcast %cst_85 : f32 to vector<8x128xf32>
    %376 = arith.addf %375, %374 : vector<8x128xf32>
    %377 = arith.divf %375, %376 : vector<8x128xf32>
    %378 = vector.extract_strided_slice %365 {offsets = [0, 256], sizes = [8, 128], strides = [1, 1]} : vector<8x512xf32> to vector<8x128xf32>
    %379 = math.tanh %378 : vector<8x128xf32>
    %380 = vector.extract_strided_slice %365 {offsets = [0, 384], sizes = [8, 128], strides = [1, 1]} : vector<8x512xf32> to vector<8x128xf32>
    %381 = arith.negf %380 : vector<8x128xf32>
    %382 = math.exp %381 : vector<8x128xf32>
    %cst_86 = arith.constant 1.000000e+00 : f32
    %383 = vector.broadcast %cst_86 : f32 to vector<8x128xf32>
    %384 = arith.addf %383, %382 : vector<8x128xf32>
    %385 = arith.divf %383, %384 : vector<8x128xf32>
    %386 = arith.mulf %377, %358 : vector<8x128xf32>
    %387 = arith.mulf %371, %379 : vector<8x128xf32>
    %388 = arith.addf %386, %387 : vector<8x128xf32>
    %389 = math.tanh %388 : vector<8x128xf32>
    %390 = arith.mulf %385, %389 : vector<8x128xf32>
    %391 = arith.addi %13, %c7_i32 : i32
    %392 = vector.broadcast %391 : i32 to vector<8x1xi32>
    %393 = arith.cmpi slt, %392, %12 : vector<8x1xi32>
    %cst_87 = arith.constant 0.000000e+00 : f32
    %394 = vector.shape_cast %393 : vector<8x1xi1> to vector<8x1xi1>
    %395 = vector.broadcast %394 : vector<8x1xi1> to vector<8x128xi1>
    %396 = vector.broadcast %cst_87 : f32 to vector<8x128xf32>
    %397 = arith.select %395, %390, %396 : vector<8x128xi1>, vector<8x128xf32>
    %398 = arith.index_cast %c7_i32 : i32 to index
    %c0_88 = arith.constant 0 : index
    %c0_89 = arith.constant 0 : index
    %399 = vector.load %arg9[%398, %c0_88, %c0_89] : memref<8x8x128xf32, #tpu.memory_space<vmem>>, vector<1x8x128xf32>
    %400 = vector.shape_cast %399 : vector<1x8x128xf32> to vector<8x128xf32>
    %401 = vector.shape_cast %397 : vector<8x128xf32> to vector<1x8x128xf32>
    tpu.vector_store %arg9[%398, %c0_88, %c0_89], %401 {strides = array<i32>} : memref<8x8x128xf32, #tpu.memory_space<vmem>>, vector<1x8x128xf32>,
    %402 = vector.shape_cast %393 : vector<8x1xi1> to vector<8x1xi1>
    %403 = vector.broadcast %402 : vector<8x1xi1> to vector<8x128xi1>
    %404 = arith.select %403, %390, %355 : vector<8x128xi1>, vector<8x128xf32>
    %405 = vector.shape_cast %393 : vector<8x1xi1> to vector<8x1xi1>
    %406 = vector.broadcast %405 : vector<8x1xi1> to vector<8x128xi1>
    %407 = arith.select %406, %388, %358 : vector<8x128xi1>, vector<8x128xf32>
    %c8_i32_90 = arith.constant 8 : i32
    %c0_91 = arith.constant 0 : index
    %c0_92 = arith.constant 0 : index
    %408 = vector.load %arg12[%c0_91, %c0_92] : memref<8x128xf32, #tpu.memory_space<vmem>>, vector<8x128xf32>
    tpu.vector_store %arg12[%c0_91, %c0_92], %404 {strides = array<i32>} : memref<8x128xf32, #tpu.memory_space<vmem>>, vector<8x128xf32>,
    %c0_93 = arith.constant 0 : index
    %c0_94 = arith.constant 0 : index
    %409 = vector.load %arg13[%c0_93, %c0_94] : memref<8x128xf32, #tpu.memory_space<vmem>>, vector<8x128xf32>
    tpu.vector_store %arg13[%c0_93, %c0_94], %407 {strides = array<i32>} : memref<8x128xf32, #tpu.memory_space<vmem>>, vector<8x128xf32>,
    %c0_95 = arith.constant 0 : index
    %c0_96 = arith.constant 0 : index
    %410 = vector.load %arg10[%c0_95, %c0_96] : memref<8x128xf32, #tpu.memory_space<vmem>>, vector<8x128xf32>
    tpu.vector_store %arg10[%c0_95, %c0_96], %404 {strides = array<i32>} : memref<8x128xf32, #tpu.memory_space<vmem>>, vector<8x128xf32>,
    %c0_97 = arith.constant 0 : index
    %c0_98 = arith.constant 0 : index
    %411 = vector.load %arg11[%c0_97, %c0_98] : memref<8x128xf32, #tpu.memory_space<vmem>>, vector<8x128xf32>
    tpu.vector_store %arg11[%c0_97, %c0_98], %407 {strides = array<i32>} : memref<8x128xf32, #tpu.memory_space<vmem>>, vector<8x128xf32>,
    return
  }
  func.func @transform_0(%arg0: i32, %arg1: i32) -> (i32, i32) {
    %c0_i32 = arith.constant 0 : i32
    %c0_i32_0 = arith.constant 0 : i32
    return %arg0, %c0_i32 : i32, i32
  }
  func.func @transform_1(%arg0: i32, %arg1: i32) -> (i32, i32, i32) {
    %c0_i32 = arith.constant 0 : i32
    %c0_i32_0 = arith.constant 0 : i32
    return %arg1, %arg0, %c0_i32 : i32, i32, i32
  }
  func.func @transform_2(%arg0: i32, %arg1: i32) -> (i32, i32) {
    %c0_i32 = arith.constant 0 : i32
    %c0_i32_0 = arith.constant 0 : i32
    %c0_i32_1 = arith.constant 0 : i32
    return %c0_i32, %c0_i32_0 : i32, i32
  }
  func.func @transform_3(%arg0: i32, %arg1: i32) -> (i32, i32) {
    %c0_i32 = arith.constant 0 : i32
    %c0_i32_0 = arith.constant 0 : i32
    %c0_i32_1 = arith.constant 0 : i32
    return %c0_i32, %c0_i32_0 : i32, i32
  }
  func.func @transform_4(%arg0: i32, %arg1: i32) -> (i32, i32) {
    %c0_i32 = arith.constant 0 : i32
    %c0_i32_0 = arith.constant 0 : i32
    %c0_i32_1 = arith.constant 0 : i32
    return %c0_i32, %c0_i32_0 : i32, i32
  }
  func.func @transform_5(%arg0: i32, %arg1: i32) -> (i32, i32) {
    %c0_i32 = arith.constant 0 : i32
    %c0_i32_0 = arith.constant 0 : i32
    return %arg0, %c0_i32 : i32, i32
  }
  func.func @transform_6(%arg0: i32, %arg1: i32) -> (i32, i32) {
    %c0_i32 = arith.constant 0 : i32
    %c0_i32_0 = arith.constant 0 : i32
    return %arg0, %c0_i32 : i32, i32
  }
  func.func @transform_7(%arg0: i32, %arg1: i32) -> (i32, i32, i32) {
    %c0_i32 = arith.constant 0 : i32
    %c0_i32_0 = arith.constant 0 : i32
    return %arg1, %arg0, %c0_i32 : i32, i32, i32
  }
  func.func @transform_8(%arg0: i32, %arg1: i32) -> (i32, i32) {
    %c0_i32 = arith.constant 0 : i32
    %c0_i32_0 = arith.constant 0 : i32
    return %arg0, %c0_i32 : i32, i32
  }
  func.func @transform_9(%arg0: i32, %arg1: i32) -> (i32, i32) {
    %c0_i32 = arith.constant 0 : i32
    %c0_i32_0 = arith.constant 0 : i32
    return %arg0, %c0_i32 : i32, i32
  }
}

</mosaic_0001>

<llo_original>
// kernel: tpu_custom_call.1
$region0: #{tpu_custom_call.1}
  #allocation0 [shape = 'u32[]', space=smem, size = 0x4, offset = 0x4, fixed_abs, tag = 'smem constant byte address 0x4 - core index']
  #allocation1 [shape = 'u32[72,128]{1,0:T(1,128)}', space=vmem, size = 0x9000, scoped, tag = 'internal scratch']
  #allocation2 [shape = 'f32[8,128]{1,0:T(8,128)}', space=vmem, size = 0x1000, scoped, tag = 'scratch operand']
  #allocation3 [shape = 'f32[8,128]{1,0:T(8,128)}', space=vmem, size = 0x1000, scoped, tag = 'scratch operand']
  #allocation4 [shape = 'f32[64,512]{1,0:T(8,128)}', space=vmem, size = 0x20000, scoped, tag = 'scratch operand']
  %s0 = inlined_call_operand.vmem [shape: s32[8,1], index: 0, kind: input, shape index: {}]
  %s1 = inlined_call_operand.hbm [shape: bf16[8,8,128], index: 1, kind: input, shape index: {}]
  %s2 = inlined_call_operand.hbm [shape: bf16[128,512], index: 2, kind: input, shape index: {}]
  %s3 = inlined_call_operand.hbm [shape: bf16[128,512], index: 3, kind: input, shape index: {}]
  %s4 = inlined_call_operand.vmem [shape: f32[1,512], index: 4, kind: input, shape index: {}]
  %s5 = inlined_call_operand.vmem [shape: f32[8,128], index: 5, kind: input, shape index: {}]
  %s6 = inlined_call_operand.hbm [shape: f32[8,128], index: 6, kind: input, shape index: {}]
  %s7 = inlined_call_operand.hbm [shape: f32[8,8,128], index: 7, kind: output, shape index: {0}]
  %s8 = inlined_call_operand.hbm [shape: f32[8,128], index: 8, kind: output, shape index: {1}]
  %s9 = inlined_call_operand.hbm [shape: f32[8,128], index: 9, kind: output, shape index: {2}]
  %10 = xla_tuple %s7, %s8, %s9
  %s11 = sld [smem:[#allocation0]]
  $region74: #{tpu_custom_call.1} parent=0
    _
  %s13 = ssub.s32 1, %s11
  %s14 = scalar_select 0, %s13, %s11
  $region1: #{tpu_custom_call.1} parent=0
    #allocation5 [shape = 'u8[16384]{0}', space=vmem, size = 0x4000, scoped, tag = 'input window, operand 1, single buffered']
    #allocation6 [shape = 's32[1]{0}', space=sflag, size = 0x4, scoped, tag = 'scoped memory for tpu_custom_call.1']
    #allocation7 [shape = 's32[1]{0}', space=sflag, size = 0x4, scoped, tag = 'scoped memory for tpu_custom_call.1']
    #allocation8 [shape = 'u8[131072]{0}', space=vmem, size = 0x20000, scoped, tag = 'input window, operand 2, single buffered']
    #allocation9 [shape = 's32[1]{0}', space=sflag, size = 0x4, scoped, tag = 'scoped memory for tpu_custom_call.1']
    #allocation10 [shape = 'u8[131072]{0}', space=vmem, size = 0x20000, scoped, tag = 'input window, operand 3, single buffered']
    #allocation11 [shape = 'u8[4096]{0}', space=vmem, size = 0x1000, scoped, tag = 'input window, operand 6, single buffered']
    #allocation12 [shape = 's32[1]{0}', space=sflag, size = 0x4, scoped, tag = 'scoped memory for tpu_custom_call.1']
    #allocation13 [shape = 'u8[32768]{0}', space=vmem, size = 0x8000, scoped, tag = 'output window, operand 0, single buffered']
    #allocation14 [shape = 'u8[4096]{0}', space=vmem, size = 0x1000, scoped, tag = 'output window, operand 1, single buffered']
    #allocation15 [shape = 's32[1]{0}', space=sflag, size = 0x4, scoped, tag = 'scoped memory for tpu_custom_call.1']
    #allocation16 [shape = 'u8[4096]{0}', space=vmem, size = 0x1000, scoped, tag = 'output window, operand 2, single buffered']
    %15 = vsyncpa [#allocation6], 0
    %16 = vsyncpa [#allocation9], 0
    %17 = vsyncpa [#allocation12], 0
    %18 = vsyncpa [#allocation7], 0
    %19 = vsyncpa [#allocation15], 0
    // Predicated region
    $region2: #{tpu_custom_call.1} parent=1 // pred_check
      _
    $region3: #{tpu_custom_call.1} parent=1 // pred_check_branch
      %21 = sbr.rel (0) target = $region5
    $region4: #{tpu_custom_call.1} parent=1 // pred_region
      _
    $region5: #{tpu_custom_call.1} parent=1 // pred_fallthru
      _
    // Predicated region
    $region6: #{tpu_custom_call.1} parent=1 // pred_check
      _
    $region7: #{tpu_custom_call.1} parent=1 // pred_check_branch
      %23 = sbr.rel (0) target = $region9
    $region8: #{tpu_custom_call.1} parent=1 // pred_region
      %25 = vsyncadd [#allocation6], 0
      %s26 = sshll.u32 %s1, 4
      %s27 = int_to_ptr.hbm [resolvable:$true] %s26
      %s28 = sshll.u32 [#allocation5], 4
      %s29 = int_to_ptr.vmem [resolvable:$true] %s28
      %34 = dma.hbm_to_vmem [thread:$0]  %s27, 512, %s29, [#allocation6], 64, 64, 4
    $region9: #{tpu_custom_call.1} parent=1 // pred_fallthru
      _
    // Predicated region
    $region10: #{tpu_custom_call.1} parent=1 // pred_check
      _
    $region11: #{tpu_custom_call.1} parent=1 // pred_check_branch
      %36 = sbr.rel (0) target = $region13
    $region12: #{tpu_custom_call.1} parent=1 // pred_region
      %38 = vsyncadd [#allocation9], 0
      %s39 = sshll.u32 %s2, 4
      %s40 = int_to_ptr.hbm [resolvable:$true] %s39
      %s41 = sshll.u32 [#allocation8], 4
      %s42 = int_to_ptr.vmem [resolvable:$true] %s41
      %47 = dma.hbm_to_vmem [thread:$0]  %s40, 4096, %s42, [#allocation9], 256, 256, 16
    $region13: #{tpu_custom_call.1} parent=1 // pred_fallthru
      _
    // Predicated region
    $region14: #{tpu_custom_call.1} parent=1 // pred_check
      _
    $region15: #{tpu_custom_call.1} parent=1 // pred_check_branch
      %49 = sbr.rel (0) target = $region17
    $region16: #{tpu_custom_call.1} parent=1 // pred_region
      %51 = vsyncadd [#allocation9], 0
      %s52 = sshll.u32 %s3, 4
      %s53 = int_to_ptr.hbm [resolvable:$true] %s52
      %s54 = sshll.u32 [#allocation10], 4
      %s55 = int_to_ptr.vmem [resolvable:$true] %s54
      %60 = dma.hbm_to_vmem [thread:$0]  %s53, 4096, %s55, [#allocation9], 256, 256, 16
    $region17: #{tpu_custom_call.1} parent=1 // pred_fallthru
      _
    // Predicated region
    $region18: #{tpu_custom_call.1} parent=1 // pred_check
      _
    $region19: #{tpu_custom_call.1} parent=1 // pred_check_branch
      %62 = sbr.rel (0) target = $region21
    $region20: #{tpu_custom_call.1} parent=1 // pred_region
      _
    $region21: #{tpu_custom_call.1} parent=1 // pred_fallthru
      _
    // Predicated region
    $region22: #{tpu_custom_call.1} parent=1 // pred_check
      _
    $region23: #{tpu_custom_call.1} parent=1 // pred_check_branch
      %64 = sbr.rel (0) target = $region25
    $region24: #{tpu_custom_call.1} parent=1 // pred_region
      _
    $region25: #{tpu_custom_call.1} parent=1 // pred_fallthru
      _
    // Predicated region
    $region26: #{tpu_custom_call.1} parent=1 // pred_check
      _
    $region27: #{tpu_custom_call.1} parent=1 // pred_check_branch
      %66 = sbr.rel (0) target = $region29
    $region28: #{tpu_custom_call.1} parent=1 // pred_region
      %68 = vsyncadd [#allocation12], 0
      %s70 = sshll.u32 %s6, 4
      %s71 = int_to_ptr.hbm [resolvable:$true] %s70
      %s72 = sshll.u32 [#allocation11], 4
      %s73 = int_to_ptr.vmem [resolvable:$true] %s72
      %75 = dma.hbm_to_vmem [thread:$0]  %s71, 128, %s73, [#allocation12]
    $region29: #{tpu_custom_call.1} parent=1 // pred_fallthru
      _
    // Predicated region
    $region30: #{tpu_custom_call.1} parent=1 // pred_check
      _
    $region31: #{tpu_custom_call.1} parent=1 // pred_check_branch
      %77 = sbr.rel (0) target = $region33
    $region32: #{tpu_custom_call.1} parent=1 // pred_region
      %79 = dma.done [#allocation6], 512
    $region33: #{tpu_custom_call.1} parent=1 // pred_fallthru
      _
    // Predicated region
    $region34: #{tpu_custom_call.1} parent=1 // pred_check
      _
    $region35: #{tpu_custom_call.1} parent=1 // pred_check_branch
      %81 = sbr.rel (0) target = $region37
    $region36: #{tpu_custom_call.1} parent=1 // pred_region
      %83 = dma.done [#allocation9], 4096
    $region37: #{tpu_custom_call.1} parent=1 // pred_fallthru
      _
    // Predicated region
    $region38: #{tpu_custom_call.1} parent=1 // pred_check
      _
    $region39: #{tpu_custom_call.1} parent=1 // pred_check_branch
      %85 = sbr.rel (0) target = $region41
    $region40: #{tpu_custom_call.1} parent=1 // pred_region
      %87 = dma.done [#allocation9], 4096
    $region41: #{tpu_custom_call.1} parent=1 // pred_fallthru
      _
    // Predicated region
    $region42: #{tpu_custom_call.1} parent=1 // pred_check
      _
    $region43: #{tpu_custom_call.1} parent=1 // pred_check_branch
      %89 = sbr.rel (0) target = $region45
    $region44: #{tpu_custom_call.1} parent=1 // pred_region
      %91 = dma.done [#allocation12], 128
    $region45: #{tpu_custom_call.1} parent=1 // pred_fallthru
      _
    %p92 = scmp.eq.s32.totalorder 0, 0
    // Predicated region
    $region46: #{tpu_custom_call.1} parent=1 // pred_check
      %p93 = pneg %p92
    $region47: #{tpu_custom_call.1} parent=1 // pred_check_branch
      %95 = sbr.rel (%p93) target = $region49
    $region48: #{tpu_custom_call.1} parent=1 // pred_region
      %v96 = vld [vmem:[%s5] sm:$0xff]
      %97 = vst [vmem:[#allocation2] sm:$0xff] %v96
      %v98 = vld [vmem:[#allocation11] sm:$0xff]
      %99 = vst [vmem:[#allocation3] sm:$0xff] %v98
    $region49: #{tpu_custom_call.1} parent=1 // pred_fallthru
      _
    %v100 = vld [vmem:[#allocation5] sm:$0xf]
    %v101 = vld [vmem:[#allocation5 + $0x4] sm:$0xf]
    %v102 = vld [vmem:[#allocation5 + $0x8] sm:$0xf]
    %v103 = vld [vmem:[#allocation5 + $0xc] sm:$0xf]
    %v104 = vld [vmem:[#allocation5 + $0x10] sm:$0xf]
    %v105 = vld [vmem:[#allocation5 + $0x14] sm:$0xf]
    %v106 = vld [vmem:[#allocation5 + $0x18] sm:$0xf]
    %v107 = vld [vmem:[#allocation5 + $0x1c] sm:$0xf]
    %v108 = vld [vmem:[#allocation8] sm:$0xff]
    %v109 = vld [vmem:[#allocation8 + $0x8] sm:$0xff]
    %v110 = vld [vmem:[#allocation8 + $0x10] sm:$0xff]
    %v111 = vld [vmem:[#allocation8 + $0x18] sm:$0xff]
    %v112 = vld [vmem:[#allocation8 + $0x20] sm:$0xff]
    %v113 = vld [vmem:[#allocation8 + $0x28] sm:$0xff]
    %v114 = vld [vmem:[#allocation8 + $0x30] sm:$0xff]
    %v115 = vld [vmem:[#allocation8 + $0x38] sm:$0xff]
    %v116 = vld [vmem:[#allocation8 + $0x40] sm:$0xff]
    %v117 = vld [vmem:[#allocation8 + $0x48] sm:$0xff]
    %v118 = vld [vmem:[#allocation8 + $0x50] sm:$0xff]
    %v119 = vld [vmem:[#allocation8 + $0x58] sm:$0xff]
    %v120 = vld [vmem:[#allocation8 + $0x60] sm:$0xff]
    %v121 = vld [vmem:[#allocation8 + $0x68] sm:$0xff]
    %v122 = vld [vmem:[#allocation8 + $0x70] sm:$0xff]
    %v123 = vld [vmem:[#allocation8 + $0x78] sm:$0xff]
    %v124 = vld [vmem:[#allocation8 + $0x80] sm:$0xff]
    %v125 = vld [vmem:[#allocation8 + $0x88] sm:$0xff]
    %v126 = vld [vmem:[#allocation8 + $0x90] sm:$0xff]
    %v127 = vld [vmem:[#allocation8 + $0x98] sm:$0xff]
    %v128 = vld [vmem:[#allocation8 + $0xa0] sm:$0xff]
    %v129 = vld [vmem:[#allocation8 + $0xa8] sm:$0xff]
    %v130 = vld [vmem:[#allocation8 + $0xb0] sm:$0xff]
    %v131 = vld [vmem:[#allocation8 + $0xb8] sm:$0xff]
    %v132 = vld [vmem:[#allocation8 + $0xc0] sm:$0xff]
    %v133 = vld [vmem:[#allocation8 + $0xc8] sm:$0xff]
    %v134 = vld [vmem:[#allocation8 + $0xd0] sm:$0xff]
    %v135 = vld [vmem:[#allocation8 + $0xd8] sm:$0xff]
    %v136 = vld [vmem:[#allocation8 + $0xe0] sm:$0xff]
    %v137 = vld [vmem:[#allocation8 + $0xe8] sm:$0xff]
    %v138 = vld [vmem:[#allocation8 + $0xf0] sm:$0xff]
    %v139 = vld [vmem:[#allocation8 + $0xf8] sm:$0xff]
    %v140 = vld [vmem:[%s4] sm:$0xf]
    %v142 = vperm.slane %v140, 0
    %v143 = vperm.slane %v140, 1
    %v144 = vperm.slane %v140, 2
    %v145 = vperm.slane %v140, 3
    %v158 = vunpack.c.l.b16 %v100
    %v159 = vunpack.c.l.b16 %v101
    %v160 = vunpack.c.l.b16 %v102
    %v161 = vunpack.c.l.b16 %v103
    %v162 = vunpack.c.l.b16 %v104
    %v163 = vunpack.c.l.b16 %v105
    %v164 = vunpack.c.l.b16 %v106
    %v165 = vunpack.c.l.b16 %v107
    %v166 = vpack.c.b16 %v159, %v158
    %v167 = vpack.c.b16 %v161, %v160
    %v168 = vpack.c.b16 %v163, %v162
    %v169 = vpack.c.b16 %v165, %v164
    %v206 = vunpack.c.l.b16 %v108
    %v207 = vunpack.c.h.b16 %v108
    %v208 = vunpack.c.l.b16 %v109
    %v209 = vunpack.c.h.b16 %v109
    %v210 = vunpack.c.l.b16 %v110
    %v211 = vunpack.c.h.b16 %v110
    %v212 = vunpack.c.l.b16 %v111
    %v213 = vunpack.c.h.b16 %v111
    %v214 = vunpack.c.l.b16 %v112
    %v215 = vunpack.c.h.b16 %v112
    %v216 = vunpack.c.l.b16 %v113
    %v217 = vunpack.c.h.b16 %v113
    %v218 = vunpack.c.l.b16 %v114
    %v219 = vunpack.c.h.b16 %v114
    %v220 = vunpack.c.l.b16 %v115
    %v221 = vunpack.c.h.b16 %v115
    %v222 = vunpack.c.l.b16 %v116
    %v223 = vunpack.c.h.b16 %v116
    %v224 = vunpack.c.l.b16 %v117
    %v225 = vunpack.c.h.b16 %v117
    %v226 = vunpack.c.l.b16 %v118
    %v227 = vunpack.c.h.b16 %v118
    %v228 = vunpack.c.l.b16 %v119
    %v229 = vunpack.c.h.b16 %v119
    %v230 = vunpack.c.l.b16 %v120
    %v231 = vunpack.c.h.b16 %v120
    %v232 = vunpack.c.l.b16 %v121
    %v233 = vunpack.c.h.b16 %v121
    %v234 = vunpack.c.l.b16 %v122
    %v235 = vunpack.c.h.b16 %v122
    %v236 = vunpack.c.l.b16 %v123
    %v237 = vunpack.c.h.b16 %v123
    %v238 = vunpack.c.l.b16 %v124
    %v239 = vunpack.c.h.b16 %v124
    %v240 = vunpack.c.l.b16 %v125
    %v241 = vunpack.c.h.b16 %v125
    %v242 = vunpack.c.l.b16 %v126
    %v243 = vunpack.c.h.b16 %v126
    %v244 = vunpack.c.l.b16 %v127
    %v245 = vunpack.c.h.b16 %v127
    %v246 = vunpack.c.l.b16 %v128
    %v247 = vunpack.c.h.b16 %v128
    %v248 = vunpack.c.l.b16 %v129
    %v249 = vunpack.c.h.b16 %v129
    %v250 = vunpack.c.l.b16 %v130
    %v251 = vunpack.c.h.b16 %v130
    %v252 = vunpack.c.l.b16 %v131
    %v253 = vunpack.c.h.b16 %v131
    %v254 = vunpack.c.l.b16 %v132
    %v255 = vunpack.c.h.b16 %v132
    %v256 = vunpack.c.l.b16 %v133
    %v257 = vunpack.c.h.b16 %v133
    %v258 = vunpack.c.l.b16 %v134
    %v259 = vunpack.c.h.b16 %v134
    %v260 = vunpack.c.l.b16 %v135
    %v261 = vunpack.c.h.b16 %v135
    %v262 = vunpack.c.l.b16 %v136
    %v263 = vunpack.c.h.b16 %v136
    %v264 = vunpack.c.l.b16 %v137
    %v265 = vunpack.c.h.b16 %v137
    %v266 = vunpack.c.l.b16 %v138
    %v267 = vunpack.c.h.b16 %v138
    %v268 = vunpack.c.l.b16 %v139
    %v269 = vunpack.c.h.b16 %v139
    %v270 = vpack.c.b16 %v210, %v206
    %v271 = vpack.c.b16 %v211, %v207
    %v272 = vpack.c.b16 %v212, %v208
    %v273 = vpack.c.b16 %v213, %v209
    %v274 = vpack.c.b16 %v218, %v214
    %v275 = vpack.c.b16 %v219, %v215
    %v276 = vpack.c.b16 %v220, %v216
    %v277 = vpack.c.b16 %v221, %v217
    %v278 = vpack.c.b16 %v226, %v222
    %v279 = vpack.c.b16 %v227, %v223
    %v280 = vpack.c.b16 %v228, %v224
    %v281 = vpack.c.b16 %v229, %v225
    %v282 = vpack.c.b16 %v234, %v230
    %v283 = vpack.c.b16 %v235, %v231
    %v284 = vpack.c.b16 %v236, %v232
    %v285 = vpack.c.b16 %v237, %v233
    %v286 = vpack.c.b16 %v242, %v238
    %v287 = vpack.c.b16 %v243, %v239
    %v288 = vpack.c.b16 %v244, %v240
    %v289 = vpack.c.b16 %v245, %v241
    %v290 = vpack.c.b16 %v250, %v246
    %v291 = vpack.c.b16 %v251, %v247
    %v292 = vpack.c.b16 %v252, %v248
    %v293 = vpack.c.b16 %v253, %v249
    %v294 = vpack.c.b16 %v258, %v254
    %v295 = vpack.c.b16 %v259, %v255
    %v296 = vpack.c.b16 %v260, %v256
    %v297 = vpack.c.b16 %v261, %v257
    %v298 = vpack.c.b16 %v266, %v262
    %v299 = vpack.c.b16 %v267, %v263
    %v300 = vpack.c.b16 %v268, %v264
    %v301 = vpack.c.b16 %v269, %v265
    %334 = vmatpush.bf16.msra.mxu0 %v298
    %335 = vmatpush.bf16.msra.mxu0 %v294
    %336 = vmatpush.bf16.msra.mxu0 %v290
    %337 = vmatpush.bf16.msra.mxu0 %v286
    %338 = vmatpush.bf16.msra.mxu0 %v282
    %339 = vmatpush.bf16.msra.mxu0 %v278
    %340 = vmatpush.bf16.msra.mxu0 %v274
    %341 = vmatpush.bf16.msra.mxu0 %v270
    %342 = vmatmul.bf16.gmra.mxu0 %v166
    %v343 = vpop.f32.mrf.mxu0
    %v344 = vadd.f32 %v142, %v343
    %v345 = vpop.f32.mrf.mxu0
    %v346 = vadd.f32 %v142, %v345
    %347 = vmatmul.bf16.gmra.mxu0 %v167
    %v348 = vpop.f32.mrf.mxu0
    %v349 = vadd.f32 %v142, %v348
    %v350 = vpop.f32.mrf.mxu0
    %v351 = vadd.f32 %v142, %v350
    %352 = vmatmul.bf16.gmra.mxu0 %v168
    %v353 = vpop.f32.mrf.mxu0
    %v354 = vadd.f32 %v142, %v353
    %v355 = vpop.f32.mrf.mxu0
    %v356 = vadd.f32 %v142, %v355
    %357 = vmatmul.bf16.gmra.mxu0 %v169
    %v358 = vpop.f32.mrf.mxu0
    %v359 = vadd.f32 %v142, %v358
    %v360 = vpop.f32.mrf.mxu0
    %v361 = vadd.f32 %v142, %v360
    %362 = vdwg.mxu0
    %363 = vmatpush.bf16.msra.mxu0 %v299
    %364 = vmatpush.bf16.msra.mxu0 %v295
    %365 = vmatpush.bf16.msra.mxu0 %v291
    %366 = vmatpush.bf16.msra.mxu0 %v287
    %367 = vmatpush.bf16.msra.mxu0 %v283
    %368 = vmatpush.bf16.msra.mxu0 %v279
    %369 = vmatpush.bf16.msra.mxu0 %v275
    %370 = vmatpush.bf16.msra.mxu0 %v271
    %371 = vmatmul.bf16.gmra.mxu0 %v166
    %v372 = vpop.f32.mrf.mxu0
    %v373 = vadd.f32 %v143, %v372
    %v374 = vpop.f32.mrf.mxu0
    %v375 = vadd.f32 %v143, %v374
    %376 = vmatmul.bf16.gmra.mxu0 %v167
    %v377 = vpop.f32.mrf.mxu0
    %v378 = vadd.f32 %v143, %v377
    %v379 = vpop.f32.mrf.mxu0
    %v380 = vadd.f32 %v143, %v379
    %381 = vmatmul.bf16.gmra.mxu0 %v168
    %v382 = vpop.f32.mrf.mxu0
    %v383 = vadd.f32 %v143, %v382
    %v384 = vpop.f32.mrf.mxu0
    %v385 = vadd.f32 %v143, %v384
    %386 = vmatmul.bf16.gmra.mxu0 %v169
    %v387 = vpop.f32.mrf.mxu0
    %v388 = vadd.f32 %v143, %v387
    %v389 = vpop.f32.mrf.mxu0
    %v390 = vadd.f32 %v143, %v389
    %391 = vdwg.mxu0
    %392 = vmatpush.bf16.msra.mxu0 %v300
    %393 = vmatpush.bf16.msra.mxu0 %v296
    %394 = vmatpush.bf16.msra.mxu0 %v292
    %395 = vmatpush.bf16.msra.mxu0 %v288
    %396 = vmatpush.bf16.msra.mxu0 %v284
    %397 = vmatpush.bf16.msra.mxu0 %v280
    %398 = vmatpush.bf16.msra.mxu0 %v276
    %399 = vmatpush.bf16.msra.mxu0 %v272
    %400 = vmatmul.bf16.gmra.mxu0 %v166
    %v401 = vpop.f32.mrf.mxu0
    %v402 = vadd.f32 %v144, %v401
    %v403 = vpop.f32.mrf.mxu0
    %v404 = vadd.f32 %v144, %v403
    %405 = vmatmul.bf16.gmra.mxu0 %v167
    %v406 = vpop.f32.mrf.mxu0
    %v407 = vadd.f32 %v144, %v406
    %v408 = vpop.f32.mrf.mxu0
    %v409 = vadd.f32 %v144, %v408
    %410 = vmatmul.bf16.gmra.mxu0 %v168
    %v411 = vpop.f32.mrf.mxu0
    %v412 = vadd.f32 %v144, %v411
    %v413 = vpop.f32.mrf.mxu0
    %v414 = vadd.f32 %v144, %v413
    %415 = vmatmul.bf16.gmra.mxu0 %v169
    %v416 = vpop.f32.mrf.mxu0
    %v417 = vadd.f32 %v144, %v416
    %v418 = vpop.f32.mrf.mxu0
    %v419 = vadd.f32 %v144, %v418
    %420 = vdwg.mxu0
    %421 = vmatpush.bf16.msra.mxu0 %v301
    %422 = vmatpush.bf16.msra.mxu0 %v297
    %423 = vmatpush.bf16.msra.mxu0 %v293
    %424 = vmatpush.bf16.msra.mxu0 %v289
    %425 = vmatpush.bf16.msra.mxu0 %v285
    %426 = vmatpush.bf16.msra.mxu0 %v281
    %427 = vmatpush.bf16.msra.mxu0 %v277
    %428 = vmatpush.bf16.msra.mxu0 %v273
    %429 = vmatmul.bf16.gmra.mxu0 %v166
    %v430 = vpop.f32.mrf.mxu0
    %v431 = vadd.f32 %v145, %v430
    %v432 = vpop.f32.mrf.mxu0
    %v433 = vadd.f32 %v145, %v432
    %434 = vmatmul.bf16.gmra.mxu0 %v167
    %v435 = vpop.f32.mrf.mxu0
    %v436 = vadd.f32 %v145, %v435
    %v437 = vpop.f32.mrf.mxu0
    %v438 = vadd.f32 %v145, %v437
    %439 = vmatmul.bf16.gmra.mxu0 %v168
    %v440 = vpop.f32.mrf.mxu0
    %v441 = vadd.f32 %v145, %v440
    %v442 = vpop.f32.mrf.mxu0
    %v443 = vadd.f32 %v145, %v442
    %444 = vmatmul.bf16.gmra.mxu0 %v169
    %v445 = vpop.f32.mrf.mxu0
    %v446 = vadd.f32 %v145, %v445
    %v447 = vpop.f32.mrf.mxu0
    %v448 = vadd.f32 %v145, %v447
    %449 = vdwg.mxu0
    %450 = vst [vmem:[#allocation4] sm:$0xff] %v344
    %451 = vst [vmem:[#allocation4 + $0x8] sm:$0xff] %v373
    %452 = vst [vmem:[#allocation4 + $0x10] sm:$0xff] %v402
    %453 = vst [vmem:[#allocation4 + $0x18] sm:$0xff] %v431
    %454 = vst [vmem:[#allocation4 + $0x20] sm:$0xff] %v346
    %455 = vst [vmem:[#allocation4 + $0x28] sm:$0xff] %v375
    %456 = vst [vmem:[#allocation4 + $0x30] sm:$0xff] %v404
    %457 = vst [vmem:[#allocation4 + $0x38] sm:$0xff] %v433
    %458 = vst [vmem:[#allocation4 + $0x40] sm:$0xff] %v349
    %459 = vst [vmem:[#allocation4 + $0x48] sm:$0xff] %v378
    %460 = vst [vmem:[#allocation4 + $0x50] sm:$0xff] %v407
    %461 = vst [vmem:[#allocation4 + $0x58] sm:$0xff] %v436
    %462 = vst [vmem:[#allocation4 + $0x60] sm:$0xff] %v351
    %463 = vst [vmem:[#allocation4 + $0x68] sm:$0xff] %v380
    %464 = vst [vmem:[#allocation4 + $0x70] sm:$0xff] %v409
    %465 = vst [vmem:[#allocation4 + $0x78] sm:$0xff] %v438
    %466 = vst [vmem:[#allocation4 + $0x80] sm:$0xff] %v354
    %467 = vst [vmem:[#allocation4 + $0x88] sm:$0xff] %v383
    %468 = vst [vmem:[#allocation4 + $0x90] sm:$0xff] %v412
    %469 = vst [vmem:[#allocation4 + $0x98] sm:$0xff] %v441
    %470 = vst [vmem:[#allocation4 + $0xa0] sm:$0xff] %v356
    %471 = vst [vmem:[#allocation4 + $0xa8] sm:$0xff] %v385
    %472 = vst [vmem:[#allocation4 + $0xb0] sm:$0xff] %v414
    %473 = vst [vmem:[#allocation4 + $0xb8] sm:$0xff] %v443
    %474 = vst [vmem:[#allocation4 + $0xc0] sm:$0xff] %v359
    %475 = vst [vmem:[#allocation4 + $0xc8] sm:$0xff] %v388
    %476 = vst [vmem:[#allocation4 + $0xd0] sm:$0xff] %v417
    %477 = vst [vmem:[#allocation4 + $0xd8] sm:$0xff] %v446
    %478 = vst [vmem:[#allocation4 + $0xe0] sm:$0xff] %v361
    %479 = vst [vmem:[#allocation4 + $0xe8] sm:$0xff] %v390
    %480 = vst [vmem:[#allocation4 + $0xf0] sm:$0xff] %v419
    %481 = vst [vmem:[#allocation4 + $0xf8] sm:$0xff] %v448
    %v482 = vld [vmem:[#allocation10] sm:$0xff]
    %v483 = vld [vmem:[#allocation10 + $0x8] sm:$0xff]
    %v484 = vld [vmem:[#allocation10 + $0x10] sm:$0xff]
    %v485 = vld [vmem:[#allocation10 + $0x18] sm:$0xff]
    %v486 = vld [vmem:[#allocation10 + $0x20] sm:$0xff]
    %v487 = vld [vmem:[#allocation10 + $0x28] sm:$0xff]
    %v488 = vld [vmem:[#allocation10 + $0x30] sm:$0xff]
    %v489 = vld [vmem:[#allocation10 + $0x38] sm:$0xff]
    %v490 = vld [vmem:[#allocation10 + $0x40] sm:$0xff]
    %v491 = vld [vmem:[#allocation10 + $0x48] sm:$0xff]
    %v492 = vld [vmem:[#allocation10 + $0x50] sm:$0xff]
    %v493 = vld [vmem:[#allocation10 + $0x58] sm:$0xff]
    %v494 = vld [vmem:[#allocation10 + $0x60] sm:$0xff]
    %v495 = vld [vmem:[#allocation10 + $0x68] sm:$0xff]
    %v496 = vld [vmem:[#allocation10 + $0x70] sm:$0xff]
    %v497 = vld [vmem:[#allocation10 + $0x78] sm:$0xff]
    %v498 = vld [vmem:[#allocation10 + $0x80] sm:$0xff]
    %v499 = vld [vmem:[#allocation10 + $0x88] sm:$0xff]
    %v500 = vld [vmem:[#allocation10 + $0x90] sm:$0xff]
    %v501 = vld [vmem:[#allocation10 + $0x98] sm:$0xff]
    %v502 = vld [vmem:[#allocation10 + $0xa0] sm:$0xff]
    %v503 = vld [vmem:[#allocation10 + $0xa8] sm:$0xff]
    %v504 = vld [vmem:[#allocation10 + $0xb0] sm:$0xff]
    %v505 = vld [vmem:[#allocation10 + $0xb8] sm:$0xff]
    %v506 = vld [vmem:[#allocation10 + $0xc0] sm:$0xff]
    %v507 = vld [vmem:[#allocation10 + $0xc8] sm:$0xff]
    %v508 = vld [vmem:[#allocation10 + $0xd0] sm:$0xff]
    %v509 = vld [vmem:[#allocation10 + $0xd8] sm:$0xff]
    %v510 = vld [vmem:[#allocation10 + $0xe0] sm:$0xff]
    %v511 = vld [vmem:[#allocation10 + $0xe8] sm:$0xff]
    %v512 = vld [vmem:[#allocation10 + $0xf0] sm:$0xff]
    %v513 = vld [vmem:[#allocation10 + $0xf8] sm:$0xff]
    %v514 = vld [vmem:[%s0] sm:$0xff]
    %s515 = smul.u32 0, 8
    %v516 = vld [vmem:[#allocation2] sm:$0xff]
    %v517 = vld [vmem:[#allocation3] sm:$0xff]
    %s518 = smul.u32 0, 4
    %s519 = smul.addr %s518, 8
    %s520 = scalar_lea.vmem [#allocation4], %s519
    %v521 = vld [vmem:[%s520] sm:$0xff]
    %v522 = vld [vmem:[%s520 + $0x8] sm:$0xff]
    %v523 = vld [vmem:[%s520 + $0x10] sm:$0xff]
    %v524 = vld [vmem:[%s520 + $0x18] sm:$0xff]
    %v525 = vpack.c.bf16 %v516, %v516
    %v558 = vunpack.c.l.b16 %v482
    %v559 = vunpack.c.h.b16 %v482
    %v560 = vunpack.c.l.b16 %v483
    %v561 = vunpack.c.h.b16 %v483
    %v562 = vunpack.c.l.b16 %v484
    %v563 = vunpack.c.h.b16 %v484
    %v564 = vunpack.c.l.b16 %v485
    %v565 = vunpack.c.h.b16 %v485
    %v566 = vunpack.c.l.b16 %v486
    %v567 = vunpack.c.h.b16 %v486
    %v568 = vunpack.c.l.b16 %v487
    %v569 = vunpack.c.h.b16 %v487
    %v570 = vunpack.c.l.b16 %v488
    %v571 = vunpack.c.h.b16 %v488
    %v572 = vunpack.c.l.b16 %v489
    %v573 = vunpack.c.h.b16 %v489
    %v574 = vunpack.c.l.b16 %v490
    %v575 = vunpack.c.h.b16 %v490
    %v576 = vunpack.c.l.b16 %v491
    %v577 = vunpack.c.h.b16 %v491
    %v578 = vunpack.c.l.b16 %v492
    %v579 = vunpack.c.h.b16 %v492
    %v580 = vunpack.c.l.b16 %v493
    %v581 = vunpack.c.h.b16 %v493
    %v582 = vunpack.c.l.b16 %v494
    %v583 = vunpack.c.h.b16 %v494
    %v584 = vunpack.c.l.b16 %v495
    %v585 = vunpack.c.h.b16 %v495
    %v586 = vunpack.c.l.b16 %v496
    %v587 = vunpack.c.h.b16 %v496
    %v588 = vunpack.c.l.b16 %v497
    %v589 = vunpack.c.h.b16 %v497
    %v590 = vunpack.c.l.b16 %v498
    %v591 = vunpack.c.h.b16 %v498
    %v592 = vunpack.c.l.b16 %v499
    %v593 = vunpack.c.h.b16 %v499
    %v594 = vunpack.c.l.b16 %v500
    %v595 = vunpack.c.h.b16 %v500
    %v596 = vunpack.c.l.b16 %v501
    %v597 = vunpack.c.h.b16 %v501
    %v598 = vunpack.c.l.b16 %v502
    %v599 = vunpack.c.h.b16 %v502
    %v600 = vunpack.c.l.b16 %v503
    %v601 = vunpack.c.h.b16 %v503
    %v602 = vunpack.c.l.b16 %v504
    %v603 = vunpack.c.h.b16 %v504
    %v604 = vunpack.c.l.b16 %v505
    %v605 = vunpack.c.h.b16 %v505
    %v606 = vunpack.c.l.b16 %v506
    %v607 = vunpack.c.h.b16 %v506
    %v608 = vunpack.c.l.b16 %v507
    %v609 = vunpack.c.h.b16 %v507
    %v610 = vunpack.c.l.b16 %v508
    %v611 = vunpack.c.h.b16 %v508
    %v612 = vunpack.c.l.b16 %v509
    %v613 = vunpack.c.h.b16 %v509
    %v614 = vunpack.c.l.b16 %v510
    %v615 = vunpack.c.h.b16 %v510
    %v616 = vunpack.c.l.b16 %v511
    %v617 = vunpack.c.h.b16 %v511
    %v618 = vunpack.c.l.b16 %v512
    %v619 = vunpack.c.h.b16 %v512
    %v620 = vunpack.c.l.b16 %v513
    %v621 = vunpack.c.h.b16 %v513
    %v622 = vpack.c.b16 %v562, %v558
    %v623 = vpack.c.b16 %v563, %v559
    %v624 = vpack.c.b16 %v564, %v560
    %v625 = vpack.c.b16 %v565, %v561
    %v626 = vpack.c.b16 %v570, %v566
    %v627 = vpack.c.b16 %v571, %v567
    %v628 = vpack.c.b16 %v572, %v568
    %v629 = vpack.c.b16 %v573, %v569
    %v630 = vpack.c.b16 %v578, %v574
    %v631 = vpack.c.b16 %v579, %v575
    %v632 = vpack.c.b16 %v580, %v576
    %v633 = vpack.c.b16 %v581, %v577
    %v634 = vpack.c.b16 %v586, %v582
    %v635 = vpack.c.b16 %v587, %v583
    %v636 = vpack.c.b16 %v588, %v584
    %v637 = vpack.c.b16 %v589, %v585
    %v638 = vpack.c.b16 %v594, %v590
    %v639 = vpack.c.b16 %v595, %v591
    %v640 = vpack.c.b16 %v596, %v592
    %v641 = vpack.c.b16 %v597, %v593
    %v642 = vpack.c.b16 %v602, %v598
    %v643 = vpack.c.b16 %v603, %v599
    %v644 = vpack.c.b16 %v604, %v600
    %v645 = vpack.c.b16 %v605, %v601
    %v646 = vpack.c.b16 %v610, %v606
    %v647 = vpack.c.b16 %v611, %v607
    %v648 = vpack.c.b16 %v612, %v608
    %v649 = vpack.c.b16 %v613, %v609
    %v650 = vpack.c.b16 %v618, %v614
    %v651 = vpack.c.b16 %v619, %v615
    %v652 = vpack.c.b16 %v620, %v616
    %v653 = vpack.c.b16 %v621, %v617
    %686 = vmatpush.bf16.msra.mxu0 %v650
    %687 = vmatpush.bf16.msra.mxu0 %v646
    %688 = vmatpush.bf16.msra.mxu0 %v642
    %689 = vmatpush.bf16.msra.mxu0 %v638
    %690 = vmatpush.bf16.msra.mxu0 %v634
    %691 = vmatpush.bf16.msra.mxu0 %v630
    %692 = vmatpush.bf16.msra.mxu0 %v626
    %693 = vmatpush.bf16.msra.mxu0 %v622
    %694 = vmatmul.bf16.gmra.mxu0 %v525
    %v695 = vpop.f32.mrf.mxu0
    %v696 = vadd.f32 0.0, %v695
    %v697 = vpop.f32.mrf.mxu0
    %698 = vdwg.mxu0
    %699 = vmatpush.bf16.msra.mxu0 %v651
    %700 = vmatpush.bf16.msra.mxu0 %v647
    %701 = vmatpush.bf16.msra.mxu0 %v643
    %702 = vmatpush.bf16.msra.mxu0 %v639
    %703 = vmatpush.bf16.msra.mxu0 %v635
    %704 = vmatpush.bf16.msra.mxu0 %v631
    %705 = vmatpush.bf16.msra.mxu0 %v627
    %706 = vmatpush.bf16.msra.mxu0 %v623
    %707 = vmatmul.bf16.gmra.mxu0 %v525
    %v708 = vpop.f32.mrf.mxu0
    %v709 = vadd.f32 0.0, %v708
    %v710 = vpop.f32.mrf.mxu0
    %711 = vdwg.mxu0
    %712 = vmatpush.bf16.msra.mxu0 %v652
    %713 = vmatpush.bf16.msra.mxu0 %v648
    %714 = vmatpush.bf16.msra.mxu0 %v644
    %715 = vmatpush.bf16.msra.mxu0 %v640
    %716 = vmatpush.bf16.msra.mxu0 %v636
    %717 = vmatpush.bf16.msra.mxu0 %v632
    %718 = vmatpush.bf16.msra.mxu0 %v628
    %719 = vmatpush.bf16.msra.mxu0 %v624
    %720 = vmatmul.bf16.gmra.mxu0 %v525
    %v721 = vpop.f32.mrf.mxu0
    %v722 = vadd.f32 0.0, %v721
    %v723 = vpop.f32.mrf.mxu0
    %724 = vdwg.mxu0
    %725 = vmatpush.bf16.msra.mxu0 %v653
    %726 = vmatpush.bf16.msra.mxu0 %v649
    %727 = vmatpush.bf16.msra.mxu0 %v645
    %728 = vmatpush.bf16.msra.mxu0 %v641
    %729 = vmatpush.bf16.msra.mxu0 %v637
    %730 = vmatpush.bf16.msra.mxu0 %v633
    %731 = vmatpush.bf16.msra.mxu0 %v629
    %732 = vmatpush.bf16.msra.mxu0 %v625
    %733 = vmatmul.bf16.gmra.mxu0 %v525
    %v734 = vpop.f32.mrf.mxu0
    %v735 = vadd.f32 0.0, %v734
    %v736 = vpop.f32.mrf.mxu0
    %737 = vdwg.mxu0
    %v738 = vadd.f32 %v521, %v696
    %v739 = vadd.f32 %v522, %v709
    %v740 = vadd.f32 %v523, %v722
    %v741 = vadd.f32 %v524, %v735
    %v742 = vxor.u32 %v738, 2147483648
    %v743 = vmul.f32 %v742, 1.442695
    %v744 = vpow.pop %v743
    %v745 = vadd.f32 %v744, 1.0
    %v746 = vrcp.pop %v745
    %v747 = vmul.f32 %v745, %v746
    %v748 = vsub.f32 1.0, %v747
    %v749 = vmul.f32 %v746, %v748
    %v750 = vadd.f32 %v746, %v749
    %vm751 = vweird.f32 %v745
    %vm752 = vweird.f32 %v746
    %vm753 = vmor %vm751, %vm752
    %v754 = vsel %vm753, %v746, %v750
    %v755 = vand.u32 2147483647, %v745
    %vm756 = vcmp.eq.f32.partialorder %v755, 8.507059e+37
    %v757 = vand.u32 %v745, 2147483648
    %v758 = vor.u32 1.1754944e-38, %v757
    %v759 = vsel %vm756, %v758, %v754
    %v760 = vmul.f32 1.0, %v759
    %v761 = vxor.u32 %v739, 2147483648
    %v762 = vmul.f32 %v761, 1.442695
    %v763 = vpow.pop %v762
    %v764 = vadd.f32 %v763, 1.0
    %v765 = vrcp.pop %v764
    %v766 = vmul.f32 %v764, %v765
    %v767 = vsub.f32 1.0, %v766
    %v768 = vmul.f32 %v765, %v767
    %v769 = vadd.f32 %v765, %v768
    %vm770 = vweird.f32 %v764
    %vm771 = vweird.f32 %v765
    %vm772 = vmor %vm770, %vm771
    %v773 = vsel %vm772, %v765, %v769
    %v774 = vand.u32 2147483647, %v764
    %vm775 = vcmp.eq.f32.partialorder %v774, 8.507059e+37
    %v776 = vand.u32 %v764, 2147483648
    %v777 = vor.u32 1.1754944e-38, %v776
    %v778 = vsel %vm775, %v777, %v773
    %v779 = vmul.f32 1.0, %v778
    %v780 = vtanh.pop %v740
    %v781 = vxor.u32 %v741, 2147483648
    %v782 = vmul.f32 %v781, 1.442695
    %v783 = vpow.pop %v782
    %v784 = vadd.f32 %v783, 1.0
    %v785 = vrcp.pop %v784
    %v786 = vmul.f32 %v784, %v785
    %v787 = vsub.f32 1.0, %v786
    %v788 = vmul.f32 %v785, %v787
    %v789 = vadd.f32 %v785, %v788
    %vm790 = vweird.f32 %v784
    %vm791 = vweird.f32 %v785
    %vm792 = vmor %vm790, %vm791
    %v793 = vsel %vm792, %v785, %v789
    %v794 = vand.u32 2147483647, %v784
    %vm795 = vcmp.eq.f32.partialorder %v794, 8.507059e+37
    %v796 = vand.u32 %v784, 2147483648
    %v797 = vor.u32 1.1754944e-38, %v796
    %v798 = vsel %vm795, %v797, %v793
    %v799 = vmul.f32 1.0, %v798
    %v800 = vmul.f32 %v779, %v517
    %v801 = vmul.f32 %v760, %v780
    %v802 = vadd.f32 %v800, %v801
    %v803 = vtanh.pop %v802
    %v804 = vmul.f32 %v799, %v803
    %v805 = vstv %s515
    %vm806 = vcmp.lt.s32.totalorder %v805, %v514
    %v807 = vsel %vm806, 1, 0
    %808 = vset.pattern.permute.xlu0 0
    %809 = vperm.xlu0 %808, %v807
    %v810 = vpop.permute.xlu0 %809
    %vm811 = vcmp.eq.s32.totalorder %v810, 1
    %v812 = vsel %vm811, %v804, 0.0
    %813 = vst [vmem:[#allocation13] sm:$0xff] %v812
    %v814 = vsel %vm811, %v804, %v516
    %v815 = vsel %vm811, %v802, %v517
    %s816 = smul.u32 1, 4
    %s817 = smul.addr %s816, 8
    %s818 = scalar_lea.vmem [#allocation4], %s817
    %v819 = vld [vmem:[%s818] sm:$0xff]
    %v820 = vld [vmem:[%s818 + $0x8] sm:$0xff]
    %v821 = vld [vmem:[%s818 + $0x10] sm:$0xff]
    %v822 = vld [vmem:[%s818 + $0x18] sm:$0xff]
    %v823 = vpack.c.bf16 %v814, %v814
    %824 = vmatpush.bf16.msra.mxu0 %v650
    %825 = vmatpush.bf16.msra.mxu0 %v646
    %826 = vmatpush.bf16.msra.mxu0 %v642
    %827 = vmatpush.bf16.msra.mxu0 %v638
    %828 = vmatpush.bf16.msra.mxu0 %v634
    %829 = vmatpush.bf16.msra.mxu0 %v630
    %830 = vmatpush.bf16.msra.mxu0 %v626
    %831 = vmatpush.bf16.msra.mxu0 %v622
    %832 = vmatmul.bf16.gmra.mxu0 %v823
    %v833 = vpop.f32.mrf.mxu0
    %v834 = vadd.f32 0.0, %v833
    %v835 = vpop.f32.mrf.mxu0
    %836 = vdwg.mxu0
    %837 = vmatpush.bf16.msra.mxu0 %v651
    %838 = vmatpush.bf16.msra.mxu0 %v647
    %839 = vmatpush.bf16.msra.mxu0 %v643
    %840 = vmatpush.bf16.msra.mxu0 %v639
    %841 = vmatpush.bf16.msra.mxu0 %v635
    %842 = vmatpush.bf16.msra.mxu0 %v631
    %843 = vmatpush.bf16.msra.mxu0 %v627
    %844 = vmatpush.bf16.msra.mxu0 %v623
    %845 = vmatmul.bf16.gmra.mxu0 %v823
    %v846 = vpop.f32.mrf.mxu0
    %v847 = vadd.f32 0.0, %v846
    %v848 = vpop.f32.mrf.mxu0
    %849 = vdwg.mxu0
    %850 = vmatpush.bf16.msra.mxu0 %v652
    %851 = vmatpush.bf16.msra.mxu0 %v648
    %852 = vmatpush.bf16.msra.mxu0 %v644
    %853 = vmatpush.bf16.msra.mxu0 %v640
    %854 = vmatpush.bf16.msra.mxu0 %v636
    %855 = vmatpush.bf16.msra.mxu0 %v632
    %856 = vmatpush.bf16.msra.mxu0 %v628
    %857 = vmatpush.bf16.msra.mxu0 %v624
    %858 = vmatmul.bf16.gmra.mxu0 %v823
    %v859 = vpop.f32.mrf.mxu0
    %v860 = vadd.f32 0.0, %v859
    %v861 = vpop.f32.mrf.mxu0
    %862 = vdwg.mxu0
    %863 = vmatpush.bf16.msra.mxu0 %v653
    %864 = vmatpush.bf16.msra.mxu0 %v649
    %865 = vmatpush.bf16.msra.mxu0 %v645
    %866 = vmatpush.bf16.msra.mxu0 %v641
    %867 = vmatpush.bf16.msra.mxu0 %v637
    %868 = vmatpush.bf16.msra.mxu0 %v633
    %869 = vmatpush.bf16.msra.mxu0 %v629
    %870 = vmatpush.bf16.msra.mxu0 %v625
    %871 = vmatmul.bf16.gmra.mxu0 %v823
    %v872 = vpop.f32.mrf.mxu0
    %v873 = vadd.f32 0.0, %v872
    %v874 = vpop.f32.mrf.mxu0
    %875 = vdwg.mxu0
    %v876 = vadd.f32 %v819, %v834
    %v877 = vadd.f32 %v820, %v847
    %v878 = vadd.f32 %v821, %v860
    %v879 = vadd.f32 %v822, %v873
    %v880 = vxor.u32 %v876, 2147483648
    %v881 = vmul.f32 %v880, 1.442695
    %v882 = vpow.pop %v881
    %v883 = vadd.f32 %v882, 1.0
    %v884 = vrcp.pop %v883
    %v885 = vmul.f32 %v883, %v884
    %v886 = vsub.f32 1.0, %v885
    %v887 = vmul.f32 %v884, %v886
    %v888 = vadd.f32 %v884, %v887
    %vm889 = vweird.f32 %v883
    %vm890 = vweird.f32 %v884
    %vm891 = vmor %vm889, %vm890
    %v892 = vsel %vm891, %v884, %v888
    %v893 = vand.u32 2147483647, %v883
    %vm894 = vcmp.eq.f32.partialorder %v893, 8.507059e+37
    %v895 = vand.u32 %v883, 2147483648
    %v896 = vor.u32 1.1754944e-38, %v895
    %v897 = vsel %vm894, %v896, %v892
    %v898 = vmul.f32 1.0, %v897
    %v899 = vxor.u32 %v877, 2147483648
    %v900 = vmul.f32 %v899, 1.442695
    %v901 = vpow.pop %v900
    %v902 = vadd.f32 %v901, 1.0
    %v903 = vrcp.pop %v902
    %v904 = vmul.f32 %v902, %v903
    %v905 = vsub.f32 1.0, %v904
    %v906 = vmul.f32 %v903, %v905
    %v907 = vadd.f32 %v903, %v906
    %vm908 = vweird.f32 %v902
    %vm909 = vweird.f32 %v903
    %vm910 = vmor %vm908, %vm909
    %v911 = vsel %vm910, %v903, %v907
    %v912 = vand.u32 2147483647, %v902
    %vm913 = vcmp.eq.f32.partialorder %v912, 8.507059e+37
    %v914 = vand.u32 %v902, 2147483648
    %v915 = vor.u32 1.1754944e-38, %v914
    %v916 = vsel %vm913, %v915, %v911
    %v917 = vmul.f32 1.0, %v916
    %v918 = vtanh.pop %v878
    %v919 = vxor.u32 %v879, 2147483648
    %v920 = vmul.f32 %v919, 1.442695
    %v921 = vpow.pop %v920
    %v922 = vadd.f32 %v921, 1.0
    %v923 = vrcp.pop %v922
    %v924 = vmul.f32 %v922, %v923
    %v925 = vsub.f32 1.0, %v924
    %v926 = vmul.f32 %v923, %v925
    %v927 = vadd.f32 %v923, %v926
    %vm928 = vweird.f32 %v922
    %vm929 = vweird.f32 %v923
    %vm930 = vmor %vm928, %vm929
    %v931 = vsel %vm930, %v923, %v927
    %v932 = vand.u32 2147483647, %v922
    %vm933 = vcmp.eq.f32.partialorder %v932, 8.507059e+37
    %v934 = vand.u32 %v922, 2147483648
    %v935 = vor.u32 1.1754944e-38, %v934
    %v936 = vsel %vm933, %v935, %v931
    %v937 = vmul.f32 1.0, %v936
    %v938 = vmul.f32 %v917, %v815
    %v939 = vmul.f32 %v898, %v918
    %v940 = vadd.f32 %v938, %v939
    %v941 = vtanh.pop %v940
    %v942 = vmul.f32 %v937, %v941
    %s943 = sadd.s32 %s515, 1
    %v944 = vstv %s943
    %vm945 = vcmp.lt.s32.totalorder %v944, %v514
    %v946 = vsel %vm945, 1, 0
    %947 = vset.pattern.permute.xlu0 0
    %948 = vperm.xlu0 %947, %v946
    %v949 = vpop.permute.xlu0 %948
    %vm950 = vcmp.eq.s32.totalorder %v949, 1
    %v951 = vsel %vm950, %v942, 0.0
    %s952 = scalar_lea.vmem [#allocation13], 8
    %953 = vst [vmem:[%s952] sm:$0xff] %v951
    %v954 = vsel %vm950, %v942, %v814
    %v955 = vsel %vm950, %v940, %v815
    %s956 = smul.u32 2, 4
    %s957 = smul.addr %s956, 8
    %s958 = scalar_lea.vmem [#allocation4], %s957
    %v959 = vld [vmem:[%s958] sm:$0xff]
    %v960 = vld [vmem:[%s958 + $0x8] sm:$0xff]
    %v961 = vld [vmem:[%s958 + $0x10] sm:$0xff]
    %v962 = vld [vmem:[%s958 + $0x18] sm:$0xff]
    %v963 = vpack.c.bf16 %v954, %v954
    %964 = vmatpush.bf16.msra.mxu0 %v650
    %965 = vmatpush.bf16.msra.mxu0 %v646
    %966 = vmatpush.bf16.msra.mxu0 %v642
    %967 = vmatpush.bf16.msra.mxu0 %v638
    %968 = vmatpush.bf16.msra.mxu0 %v634
    %969 = vmatpush.bf16.msra.mxu0 %v630
    %970 = vmatpush.bf16.msra.mxu0 %v626
    %971 = vmatpush.bf16.msra.mxu0 %v622
    %972 = vmatmul.bf16.gmra.mxu0 %v963
    %v973 = vpop.f32.mrf.mxu0
    %v974 = vadd.f32 0.0, %v973
    %v975 = vpop.f32.mrf.mxu0
    %976 = vdwg.mxu0
    %977 = vmatpush.bf16.msra.mxu0 %v651
    %978 = vmatpush.bf16.msra.mxu0 %v647
    %979 = vmatpush.bf16.msra.mxu0 %v643
    %980 = vmatpush.bf16.msra.mxu0 %v639
    %981 = vmatpush.bf16.msra.mxu0 %v635
    %982 = vmatpush.bf16.msra.mxu0 %v631
    %983 = vmatpush.bf16.msra.mxu0 %v627
    %984 = vmatpush.bf16.msra.mxu0 %v623
    %985 = vmatmul.bf16.gmra.mxu0 %v963
    %v986 = vpop.f32.mrf.mxu0
    %v987 = vadd.f32 0.0, %v986
    %v988 = vpop.f32.mrf.mxu0
    %989 = vdwg.mxu0
    %990 = vmatpush.bf16.msra.mxu0 %v652
    %991 = vmatpush.bf16.msra.mxu0 %v648
    %992 = vmatpush.bf16.msra.mxu0 %v644
    %993 = vmatpush.bf16.msra.mxu0 %v640
    %994 = vmatpush.bf16.msra.mxu0 %v636
    %995 = vmatpush.bf16.msra.mxu0 %v632
    %996 = vmatpush.bf16.msra.mxu0 %v628
    %997 = vmatpush.bf16.msra.mxu0 %v624
    %998 = vmatmul.bf16.gmra.mxu0 %v963
    %v999 = vpop.f32.mrf.mxu0
    %v1000 = vadd.f32 0.0, %v999
    %v1001 = vpop.f32.mrf.mxu0
    %1002 = vdwg.mxu0
    %1003 = vmatpush.bf16.msra.mxu0 %v653
    %1004 = vmatpush.bf16.msra.mxu0 %v649
    %1005 = vmatpush.bf16.msra.mxu0 %v645
    %1006 = vmatpush.bf16.msra.mxu0 %v641
    %1007 = vmatpush.bf16.msra.mxu0 %v637
    %1008 = vmatpush.bf16.msra.mxu0 %v633
    %1009 = vmatpush.bf16.msra.mxu0 %v629
    %1010 = vmatpush.bf16.msra.mxu0 %v625
    %1011 = vmatmul.bf16.gmra.mxu0 %v963
    %v1012 = vpop.f32.mrf.mxu0
    %v1013 = vadd.f32 0.0, %v1012
    %v1014 = vpop.f32.mrf.mxu0
    %1015 = vdwg.mxu0
    %v1016 = vadd.f32 %v959, %v974
    %v1017 = vadd.f32 %v960, %v987
    %v1018 = vadd.f32 %v961, %v1000
    %v1019 = vadd.f32 %v962, %v1013
    %v1020 = vxor.u32 %v1016, 2147483648
    %v1021 = vmul.f32 %v1020, 1.442695
    %v1022 = vpow.pop %v1021
    %v1023 = vadd.f32 %v1022, 1.0
    %v1024 = vrcp.pop %v1023
    %v1025 = vmul.f32 %v1023, %v1024
    %v1026 = vsub.f32 1.0, %v1025
    %v1027 = vmul.f32 %v1024, %v1026
    %v1028 = vadd.f32 %v1024, %v1027
    %vm1029 = vweird.f32 %v1023
    %vm1030 = vweird.f32 %v1024
    %vm1031 = vmor %vm1029, %vm1030
    %v1032 = vsel %vm1031, %v1024, %v1028
    %v1033 = vand.u32 2147483647, %v1023
    %vm1034 = vcmp.eq.f32.partialorder %v1033, 8.507059e+37
    %v1035 = vand.u32 %v1023, 2147483648
    %v1036 = vor.u32 1.1754944e-38, %v1035
    %v1037 = vsel %vm1034, %v1036, %v1032
    %v1038 = vmul.f32 1.0, %v1037
    %v1039 = vxor.u32 %v1017, 2147483648
    %v1040 = vmul.f32 %v1039, 1.442695
    %v1041 = vpow.pop %v1040
    %v1042 = vadd.f32 %v1041, 1.0
    %v1043 = vrcp.pop %v1042
    %v1044 = vmul.f32 %v1042, %v1043
    %v1045 = vsub.f32 1.0, %v1044
    %v1046 = vmul.f32 %v1043, %v1045
    %v1047 = vadd.f32 %v1043, %v1046
    %vm1048 = vweird.f32 %v1042
    %vm1049 = vweird.f32 %v1043
    %vm1050 = vmor %vm1048, %vm1049
    %v1051 = vsel %vm1050, %v1043, %v1047
    %v1052 = vand.u32 2147483647, %v1042
    %vm1053 = vcmp.eq.f32.partialorder %v1052, 8.507059e+37
    %v1054 = vand.u32 %v1042, 2147483648
    %v1055 = vor.u32 1.1754944e-38, %v1054
    %v1056 = vsel %vm1053, %v1055, %v1051
    %v1057 = vmul.f32 1.0, %v1056
    %v1058 = vtanh.pop %v1018
    %v1059 = vxor.u32 %v1019, 2147483648
    %v1060 = vmul.f32 %v1059, 1.442695
    %v1061 = vpow.pop %v1060
    %v1062 = vadd.f32 %v1061, 1.0
    %v1063 = vrcp.pop %v1062
    %v1064 = vmul.f32 %v1062, %v1063
    %v1065 = vsub.f32 1.0, %v1064
    %v1066 = vmul.f32 %v1063, %v1065
    %v1067 = vadd.f32 %v1063, %v1066
    %vm1068 = vweird.f32 %v1062
    %vm1069 = vweird.f32 %v1063
    %vm1070 = vmor %vm1068, %vm1069
    %v1071 = vsel %vm1070, %v1063, %v1067
    %v1072 = vand.u32 2147483647, %v1062
    %vm1073 = vcmp.eq.f32.partialorder %v1072, 8.507059e+37
    %v1074 = vand.u32 %v1062, 2147483648
    %v1075 = vor.u32 1.1754944e-38, %v1074
    %v1076 = vsel %vm1073, %v1075, %v1071
    %v1077 = vmul.f32 1.0, %v1076
    %v1078 = vmul.f32 %v1057, %v955
    %v1079 = vmul.f32 %v1038, %v1058
    %v1080 = vadd.f32 %v1078, %v1079
    %v1081 = vtanh.pop %v1080
    %v1082 = vmul.f32 %v1077, %v1081
    %s1083 = sadd.s32 %s515, 2
    %v1084 = vstv %s1083
    %vm1085 = vcmp.lt.s32.totalorder %v1084, %v514
    %v1086 = vsel %vm1085, 1, 0
    %1087 = vset.pattern.permute.xlu0 0
    %1088 = vperm.xlu0 %1087, %v1086
    %v1089 = vpop.permute.xlu0 %1088
    %vm1090 = vcmp.eq.s32.totalorder %v1089, 1
    %v1091 = vsel %vm1090, %v1082, 0.0
    %s1092 = scalar_lea.vmem [#allocation13], 16
    %1093 = vst [vmem:[%s1092] sm:$0xff] %v1091
    %v1094 = vsel %vm1090, %v1082, %v954
    %v1095 = vsel %vm1090, %v1080, %v955
    %s1096 = smul.u32 3, 4
    %s1097 = smul.addr %s1096, 8
    %s1098 = scalar_lea.vmem [#allocation4], %s1097
    %v1099 = vld [vmem:[%s1098] sm:$0xff]
    %v1100 = vld [vmem:[%s1098 + $0x8] sm:$0xff]
    %v1101 = vld [vmem:[%s1098 + $0x10] sm:$0xff]
    %v1102 = vld [vmem:[%s1098 + $0x18] sm:$0xff]
    %v1103 = vpack.c.bf16 %v1094, %v1094
    %1104 = vmatpush.bf16.msra.mxu0 %v650
    %1105 = vmatpush.bf16.msra.mxu0 %v646
    %1106 = vmatpush.bf16.msra.mxu0 %v642
    %1107 = vmatpush.bf16.msra.mxu0 %v638
    %1108 = vmatpush.bf16.msra.mxu0 %v634
    %1109 = vmatpush.bf16.msra.mxu0 %v630
    %1110 = vmatpush.bf16.msra.mxu0 %v626
    %1111 = vmatpush.bf16.msra.mxu0 %v622
    %1112 = vmatmul.bf16.gmra.mxu0 %v1103
    %v1113 = vpop.f32.mrf.mxu0
    %v1114 = vadd.f32 0.0, %v1113
    %v1115 = vpop.f32.mrf.mxu0
    %1116 = vdwg.mxu0
    %1117 = vmatpush.bf16.msra.mxu0 %v651
    %1118 = vmatpush.bf16.msra.mxu0 %v647
    %1119 = vmatpush.bf16.msra.mxu0 %v643
    %1120 = vmatpush.bf16.msra.mxu0 %v639
    %1121 = vmatpush.bf16.msra.mxu0 %v635
    %1122 = vmatpush.bf16.msra.mxu0 %v631
    %1123 = vmatpush.bf16.msra.mxu0 %v627
    %1124 = vmatpush.bf16.msra.mxu0 %v623
    %1125 = vmatmul.bf16.gmra.mxu0 %v1103
    %v1126 = vpop.f32.mrf.mxu0
    %v1127 = vadd.f32 0.0, %v1126
    %v1128 = vpop.f32.mrf.mxu0
    %1129 = vdwg.mxu0
    %1130 = vmatpush.bf16.msra.mxu0 %v652
    %1131 = vmatpush.bf16.msra.mxu0 %v648
    %1132 = vmatpush.bf16.msra.mxu0 %v644
    %1133 = vmatpush.bf16.msra.mxu0 %v640
    %1134 = vmatpush.bf16.msra.mxu0 %v636
    %1135 = vmatpush.bf16.msra.mxu0 %v632
    %1136 = vmatpush.bf16.msra.mxu0 %v628
    %1137 = vmatpush.bf16.msra.mxu0 %v624
    %1138 = vmatmul.bf16.gmra.mxu0 %v1103
    %v1139 = vpop.f32.mrf.mxu0
    %v1140 = vadd.f32 0.0, %v1139
    %v1141 = vpop.f32.mrf.mxu0
    %1142 = vdwg.mxu0
    %1143 = vmatpush.bf16.msra.mxu0 %v653
    %1144 = vmatpush.bf16.msra.mxu0 %v649
    %1145 = vmatpush.bf16.msra.mxu0 %v645
    %1146 = vmatpush.bf16.msra.mxu0 %v641
    %1147 = vmatpush.bf16.msra.mxu0 %v637
    %1148 = vmatpush.bf16.msra.mxu0 %v633
    %1149 = vmatpush.bf16.msra.mxu0 %v629
    %1150 = vmatpush.bf16.msra.mxu0 %v625
    %1151 = vmatmul.bf16.gmra.mxu0 %v1103
    %v1152 = vpop.f32.mrf.mxu0
    %v1153 = vadd.f32 0.0, %v1152
    %v1154 = vpop.f32.mrf.mxu0
    %1155 = vdwg.mxu0
    %v1156 = vadd.f32 %v1099, %v1114
    %v1157 = vadd.f32 %v1100, %v1127
    %v1158 = vadd.f32 %v1101, %v1140
    %v1159 = vadd.f32 %v1102, %v1153
    %v1160 = vxor.u32 %v1156, 2147483648
    %v1161 = vmul.f32 %v1160, 1.442695
    %v1162 = vpow.pop %v1161
    %v1163 = vadd.f32 %v1162, 1.0
    %v1164 = vrcp.pop %v1163
    %v1165 = vmul.f32 %v1163, %v1164
    %v1166 = vsub.f32 1.0, %v1165
    %v1167 = vmul.f32 %v1164, %v1166
    %v1168 = vadd.f32 %v1164, %v1167
    %vm1169 = vweird.f32 %v1163
    %vm1170 = vweird.f32 %v1164
    %vm1171 = vmor %vm1169, %vm1170
    %v1172 = vsel %vm1171, %v1164, %v1168
    %v1173 = vand.u32 2147483647, %v1163
    %vm1174 = vcmp.eq.f32.partialorder %v1173, 8.507059e+37
    %v1175 = vand.u32 %v1163, 2147483648
    %v1176 = vor.u32 1.1754944e-38, %v1175
    %v1177 = vsel %vm1174, %v1176, %v1172
    %v1178 = vmul.f32 1.0, %v1177
    %v1179 = vxor.u32 %v1157, 2147483648
    %v1180 = vmul.f32 %v1179, 1.442695
    %v1181 = vpow.pop %v1180
    %v1182 = vadd.f32 %v1181, 1.0
    %v1183 = vrcp.pop %v1182
    %v1184 = vmul.f32 %v1182, %v1183
    %v1185 = vsub.f32 1.0, %v1184
    %v1186 = vmul.f32 %v1183, %v1185
    %v1187 = vadd.f32 %v1183, %v1186
    %vm1188 = vweird.f32 %v1182
    %vm1189 = vweird.f32 %v1183
    %vm1190 = vmor %vm1188, %vm1189
    %v1191 = vsel %vm1190, %v1183, %v1187
    %v1192 = vand.u32 2147483647, %v1182
    %vm1193 = vcmp.eq.f32.partialorder %v1192, 8.507059e+37
    %v1194 = vand.u32 %v1182, 2147483648
    %v1195 = vor.u32 1.1754944e-38, %v1194
    %v1196 = vsel %vm1193, %v1195, %v1191
    %v1197 = vmul.f32 1.0, %v1196
    %v1198 = vtanh.pop %v1158
    %v1199 = vxor.u32 %v1159, 2147483648
    %v1200 = vmul.f32 %v1199, 1.442695
    %v1201 = vpow.pop %v1200
    %v1202 = vadd.f32 %v1201, 1.0
    %v1203 = vrcp.pop %v1202
    %v1204 = vmul.f32 %v1202, %v1203
    %v1205 = vsub.f32 1.0, %v1204
    %v1206 = vmul.f32 %v1203, %v1205
    %v1207 = vadd.f32 %v1203, %v1206
    %vm1208 = vweird.f32 %v1202
    %vm1209 = vweird.f32 %v1203
    %vm1210 = vmor %vm1208, %vm1209
    %v1211 = vsel %vm1210, %v1203, %v1207
    %v1212 = vand.u32 2147483647, %v1202
    %vm1213 = vcmp.eq.f32.partialorder %v1212, 8.507059e+37
    %v1214 = vand.u32 %v1202, 2147483648
    %v1215 = vor.u32 1.1754944e-38, %v1214
    %v1216 = vsel %vm1213, %v1215, %v1211
    %v1217 = vmul.f32 1.0, %v1216
    %v1218 = vmul.f32 %v1197, %v1095
    %v1219 = vmul.f32 %v1178, %v1198
    %v1220 = vadd.f32 %v1218, %v1219
    %v1221 = vtanh.pop %v1220
    %v1222 = vmul.f32 %v1217, %v1221
    %s1223 = sadd.s32 %s515, 3
    %v1224 = vstv %s1223
    %vm1225 = vcmp.lt.s32.totalorder %v1224, %v514
    %v1226 = vsel %vm1225, 1, 0
    %1227 = vset.pattern.permute.xlu0 0
    %1228 = vperm.xlu0 %1227, %v1226
    %v1229 = vpop.permute.xlu0 %1228
    %vm1230 = vcmp.eq.s32.totalorder %v1229, 1
    %v1231 = vsel %vm1230, %v1222, 0.0
    %s1232 = scalar_lea.vmem [#allocation13], 24
    %1233 = vst [vmem:[%s1232] sm:$0xff] %v1231
    %v1234 = vsel %vm1230, %v1222, %v1094
    %v1235 = vsel %vm1230, %v1220, %v1095
    %s1236 = smul.u32 4, 4
    %s1237 = smul.addr %s1236, 8
    %s1238 = scalar_lea.vmem [#allocation4], %s1237
    %v1239 = vld [vmem:[%s1238] sm:$0xff]
    %v1240 = vld [vmem:[%s1238 + $0x8] sm:$0xff]
    %v1241 = vld [vmem:[%s1238 + $0x10] sm:$0xff]
    %v1242 = vld [vmem:[%s1238 + $0x18] sm:$0xff]
    %v1243 = vpack.c.bf16 %v1234, %v1234
    %1244 = vmatpush.bf16.msra.mxu0 %v650
    %1245 = vmatpush.bf16.msra.mxu0 %v646
    %1246 = vmatpush.bf16.msra.mxu0 %v642
    %1247 = vmatpush.bf16.msra.mxu0 %v638
    %1248 = vmatpush.bf16.msra.mxu0 %v634
    %1249 = vmatpush.bf16.msra.mxu0 %v630
    %1250 = vmatpush.bf16.msra.mxu0 %v626
    %1251 = vmatpush.bf16.msra.mxu0 %v622
    %1252 = vmatmul.bf16.gmra.mxu0 %v1243
    %v1253 = vpop.f32.mrf.mxu0
    %v1254 = vadd.f32 0.0, %v1253
    %v1255 = vpop.f32.mrf.mxu0
    %1256 = vdwg.mxu0
    %1257 = vmatpush.bf16.msra.mxu0 %v651
    %1258 = vmatpush.bf16.msra.mxu0 %v647
    %1259 = vmatpush.bf16.msra.mxu0 %v643
    %1260 = vmatpush.bf16.msra.mxu0 %v639
    %1261 = vmatpush.bf16.msra.mxu0 %v635
    %1262 = vmatpush.bf16.msra.mxu0 %v631
    %1263 = vmatpush.bf16.msra.mxu0 %v627
    %1264 = vmatpush.bf16.msra.mxu0 %v623
    %1265 = vmatmul.bf16.gmra.mxu0 %v1243
    %v1266 = vpop.f32.mrf.mxu0
    %v1267 = vadd.f32 0.0, %v1266
    %v1268 = vpop.f32.mrf.mxu0
    %1269 = vdwg.mxu0
    %1270 = vmatpush.bf16.msra.mxu0 %v652
    %1271 = vmatpush.bf16.msra.mxu0 %v648
    %1272 = vmatpush.bf16.msra.mxu0 %v644
    %1273 = vmatpush.bf16.msra.mxu0 %v640
    %1274 = vmatpush.bf16.msra.mxu0 %v636
    %1275 = vmatpush.bf16.msra.mxu0 %v632
    %1276 = vmatpush.bf16.msra.mxu0 %v628
    %1277 = vmatpush.bf16.msra.mxu0 %v624
    %1278 = vmatmul.bf16.gmra.mxu0 %v1243
    %v1279 = vpop.f32.mrf.mxu0
    %v1280 = vadd.f32 0.0, %v1279
    %v1281 = vpop.f32.mrf.mxu0
    %1282 = vdwg.mxu0
    %1283 = vmatpush.bf16.msra.mxu0 %v653
    %1284 = vmatpush.bf16.msra.mxu0 %v649
    %1285 = vmatpush.bf16.msra.mxu0 %v645
    %1286 = vmatpush.bf16.msra.mxu0 %v641
    %1287 = vmatpush.bf16.msra.mxu0 %v637
    %1288 = vmatpush.bf16.msra.mxu0 %v633
    %1289 = vmatpush.bf16.msra.mxu0 %v629
    %1290 = vmatpush.bf16.msra.mxu0 %v625
    %1291 = vmatmul.bf16.gmra.mxu0 %v1243
    %v1292 = vpop.f32.mrf.mxu0
    %v1293 = vadd.f32 0.0, %v1292
    %v1294 = vpop.f32.mrf.mxu0
    %1295 = vdwg.mxu0
    %v1296 = vadd.f32 %v1239, %v1254
    %v1297 = vadd.f32 %v1240, %v1267
    %v1298 = vadd.f32 %v1241, %v1280
    %v1299 = vadd.f32 %v1242, %v1293
    %v1300 = vxor.u32 %v1296, 2147483648
    %v1301 = vmul.f32 %v1300, 1.442695
    %v1302 = vpow.pop %v1301
    %v1303 = vadd.f32 %v1302, 1.0
    %v1304 = vrcp.pop %v1303
    %v1305 = vmul.f32 %v1303, %v1304
    %v1306 = vsub.f32 1.0, %v1305
    %v1307 = vmul.f32 %v1304, %v1306
    %v1308 = vadd.f32 %v1304, %v1307
    %vm1309 = vweird.f32 %v1303
    %vm1310 = vweird.f32 %v1304
    %vm1311 = vmor %vm1309, %vm1310
    %v1312 = vsel %vm1311, %v1304, %v1308
    %v1313 = vand.u32 2147483647, %v1303
    %vm1314 = vcmp.eq.f32.partialorder %v1313, 8.507059e+37
    %v1315 = vand.u32 %v1303, 2147483648
    %v1316 = vor.u32 1.1754944e-38, %v1315
    %v1317 = vsel %vm1314, %v1316, %v1312
    %v1318 = vmul.f32 1.0, %v1317
    %v1319 = vxor.u32 %v1297, 2147483648
    %v1320 = vmul.f32 %v1319, 1.442695
    %v1321 = vpow.pop %v1320
    %v1322 = vadd.f32 %v1321, 1.0
    %v1323 = vrcp.pop %v1322
    %v1324 = vmul.f32 %v1322, %v1323
    %v1325 = vsub.f32 1.0, %v1324
    %v1326 = vmul.f32 %v1323, %v1325
    %v1327 = vadd.f32 %v1323, %v1326
    %vm1328 = vweird.f32 %v1322
    %vm1329 = vweird.f32 %v1323
    %vm1330 = vmor %vm1328, %vm1329
    %v1331 = vsel %vm1330, %v1323, %v1327
    %v1332 = vand.u32 2147483647, %v1322
    %vm1333 = vcmp.eq.f32.partialorder %v1332, 8.507059e+37
    %v1334 = vand.u32 %v1322, 2147483648
    %v1335 = vor.u32 1.1754944e-38, %v1334
    %v1336 = vsel %vm1333, %v1335, %v1331
    %v1337 = vmul.f32 1.0, %v1336
    %v1338 = vtanh.pop %v1298
    %v1339 = vxor.u32 %v1299, 2147483648
    %v1340 = vmul.f32 %v1339, 1.442695
    %v1341 = vpow.pop %v1340
    %v1342 = vadd.f32 %v1341, 1.0
    %v1343 = vrcp.pop %v1342
    %v1344 = vmul.f32 %v1342, %v1343
    %v1345 = vsub.f32 1.0, %v1344
    %v1346 = vmul.f32 %v1343, %v1345
    %v1347 = vadd.f32 %v1343, %v1346
    %vm1348 = vweird.f32 %v1342
    %vm1349 = vweird.f32 %v1343
    %vm1350 = vmor %vm1348, %vm1349
    %v1351 = vsel %vm1350, %v1343, %v1347
    %v1352 = vand.u32 2147483647, %v1342
    %vm1353 = vcmp.eq.f32.partialorder %v1352, 8.507059e+37
    %v1354 = vand.u32 %v1342, 2147483648
    %v1355 = vor.u32 1.1754944e-38, %v1354
    %v1356 = vsel %vm1353, %v1355, %v1351
    %v1357 = vmul.f32 1.0, %v1356
    %v1358 = vmul.f32 %v1337, %v1235
    %v1359 = vmul.f32 %v1318, %v1338
    %v1360 = vadd.f32 %v1358, %v1359
    %v1361 = vtanh.pop %v1360
    %v1362 = vmul.f32 %v1357, %v1361
    %s1363 = sadd.s32 %s515, 4
    %v1364 = vstv %s1363
    %vm1365 = vcmp.lt.s32.totalorder %v1364, %v514
    %v1366 = vsel %vm1365, 1, 0
    %1367 = vset.pattern.permute.xlu0 0
    %1368 = vperm.xlu0 %1367, %v1366
    %v1369 = vpop.permute.xlu0 %1368
    %vm1370 = vcmp.eq.s32.totalorder %v1369, 1
    %v1371 = vsel %vm1370, %v1362, 0.0
    %s1372 = scalar_lea.vmem [#allocation13], 32
    %1373 = vst [vmem:[%s1372] sm:$0xff] %v1371
    %v1374 = vsel %vm1370, %v1362, %v1234
    %v1375 = vsel %vm1370, %v1360, %v1235
    %s1376 = smul.u32 5, 4
    %s1377 = smul.addr %s1376, 8
    %s1378 = scalar_lea.vmem [#allocation4], %s1377
    %v1379 = vld [vmem:[%s1378] sm:$0xff]
    %v1380 = vld [vmem:[%s1378 + $0x8] sm:$0xff]
    %v1381 = vld [vmem:[%s1378 + $0x10] sm:$0xff]
    %v1382 = vld [vmem:[%s1378 + $0x18] sm:$0xff]
    %v1383 = vpack.c.bf16 %v1374, %v1374
    %1384 = vmatpush.bf16.msra.mxu0 %v650
    %1385 = vmatpush.bf16.msra.mxu0 %v646
    %1386 = vmatpush.bf16.msra.mxu0 %v642
    %1387 = vmatpush.bf16.msra.mxu0 %v638
    %1388 = vmatpush.bf16.msra.mxu0 %v634
    %1389 = vmatpush.bf16.msra.mxu0 %v630
    %1390 = vmatpush.bf16.msra.mxu0 %v626
    %1391 = vmatpush.bf16.msra.mxu0 %v622
    %1392 = vmatmul.bf16.gmra.mxu0 %v1383
    %v1393 = vpop.f32.mrf.mxu0
    %v1394 = vadd.f32 0.0, %v1393
    %v1395 = vpop.f32.mrf.mxu0
    %1396 = vdwg.mxu0
    %1397 = vmatpush.bf16.msra.mxu0 %v651
    %1398 = vmatpush.bf16.msra.mxu0 %v647
    %1399 = vmatpush.bf16.msra.mxu0 %v643
    %1400 = vmatpush.bf16.msra.mxu0 %v639
    %1401 = vmatpush.bf16.msra.mxu0 %v635
    %1402 = vmatpush.bf16.msra.mxu0 %v631
    %1403 = vmatpush.bf16.msra.mxu0 %v627
    %1404 = vmatpush.bf16.msra.mxu0 %v623
    %1405 = vmatmul.bf16.gmra.mxu0 %v1383
    %v1406 = vpop.f32.mrf.mxu0
    %v1407 = vadd.f32 0.0, %v1406
    %v1408 = vpop.f32.mrf.mxu0
    %1409 = vdwg.mxu0
    %1410 = vmatpush.bf16.msra.mxu0 %v652
    %1411 = vmatpush.bf16.msra.mxu0 %v648
    %1412 = vmatpush.bf16.msra.mxu0 %v644
    %1413 = vmatpush.bf16.msra.mxu0 %v640
    %1414 = vmatpush.bf16.msra.mxu0 %v636
    %1415 = vmatpush.bf16.msra.mxu0 %v632
    %1416 = vmatpush.bf16.msra.mxu0 %v628
    %1417 = vmatpush.bf16.msra.mxu0 %v624
    %1418 = vmatmul.bf16.gmra.mxu0 %v1383
    %v1419 = vpop.f32.mrf.mxu0
    %v1420 = vadd.f32 0.0, %v1419
    %v1421 = vpop.f32.mrf.mxu0
    %1422 = vdwg.mxu0
    %1423 = vmatpush.bf16.msra.mxu0 %v653
    %1424 = vmatpush.bf16.msra.mxu0 %v649
    %1425 = vmatpush.bf16.msra.mxu0 %v645
    %1426 = vmatpush.bf16.msra.mxu0 %v641
    %1427 = vmatpush.bf16.msra.mxu0 %v637
    %1428 = vmatpush.bf16.msra.mxu0 %v633
    %1429 = vmatpush.bf16.msra.mxu0 %v629
    %1430 = vmatpush.bf16.msra.mxu0 %v625
    %1431 = vmatmul.bf16.gmra.mxu0 %v1383
    %v1432 = vpop.f32.mrf.mxu0
    %v1433 = vadd.f32 0.0, %v1432
    %v1434 = vpop.f32.mrf.mxu0
    %1435 = vdwg.mxu0
    %v1436 = vadd.f32 %v1379, %v1394
    %v1437 = vadd.f32 %v1380, %v1407
    %v1438 = vadd.f32 %v1381, %v1420
    %v1439 = vadd.f32 %v1382, %v1433
    %v1440 = vxor.u32 %v1436, 2147483648
    %v1441 = vmul.f32 %v1440, 1.442695
    %v1442 = vpow.pop %v1441
    %v1443 = vadd.f32 %v1442, 1.0
    %v1444 = vrcp.pop %v1443
    %v1445 = vmul.f32 %v1443, %v1444
    %v1446 = vsub.f32 1.0, %v1445
    %v1447 = vmul.f32 %v1444, %v1446
    %v1448 = vadd.f32 %v1444, %v1447
    %vm1449 = vweird.f32 %v1443
    %vm1450 = vweird.f32 %v1444
    %vm1451 = vmor %vm1449, %vm1450
    %v1452 = vsel %vm1451, %v1444, %v1448
    %v1453 = vand.u32 2147483647, %v1443
    %vm1454 = vcmp.eq.f32.partialorder %v1453, 8.507059e+37
    %v1455 = vand.u32 %v1443, 2147483648
    %v1456 = vor.u32 1.1754944e-38, %v1455
    %v1457 = vsel %vm1454, %v1456, %v1452
    %v1458 = vmul.f32 1.0, %v1457
    %v1459 = vxor.u32 %v1437, 2147483648
    %v1460 = vmul.f32 %v1459, 1.442695
    %v1461 = vpow.pop %v1460
    %v1462 = vadd.f32 %v1461, 1.0
    %v1463 = vrcp.pop %v1462
    %v1464 = vmul.f32 %v1462, %v1463
    %v1465 = vsub.f32 1.0, %v1464
    %v1466 = vmul.f32 %v1463, %v1465
    %v1467 = vadd.f32 %v1463, %v1466
    %vm1468 = vweird.f32 %v1462
    %vm1469 = vweird.f32 %v1463
    %vm1470 = vmor %vm1468, %vm1469
    %v1471 = vsel %vm1470, %v1463, %v1467
    %v1472 = vand.u32 2147483647, %v1462
    %vm1473 = vcmp.eq.f32.partialorder %v1472, 8.507059e+37
    %v1474 = vand.u32 %v1462, 2147483648
    %v1475 = vor.u32 1.1754944e-38, %v1474
    %v1476 = vsel %vm1473, %v1475, %v1471
    %v1477 = vmul.f32 1.0, %v1476
    %v1478 = vtanh.pop %v1438
    %v1479 = vxor.u32 %v1439, 2147483648
    %v1480 = vmul.f32 %v1479, 1.442695
    %v1481 = vpow.pop %v1480
    %v1482 = vadd.f32 %v1481, 1.0
    %v1483 = vrcp.pop %v1482
    %v1484 = vmul.f32 %v1482, %v1483
    %v1485 = vsub.f32 1.0, %v1484
    %v1486 = vmul.f32 %v1483, %v1485
    %v1487 = vadd.f32 %v1483, %v1486
    %vm1488 = vweird.f32 %v1482
    %vm1489 = vweird.f32 %v1483
    %vm1490 = vmor %vm1488, %vm1489
    %v1491 = vsel %vm1490, %v1483, %v1487
    %v1492 = vand.u32 2147483647, %v1482
    %vm1493 = vcmp.eq.f32.partialorder %v1492, 8.507059e+37
    %v1494 = vand.u32 %v1482, 2147483648
    %v1495 = vor.u32 1.1754944e-38, %v1494
    %v1496 = vsel %vm1493, %v1495, %v1491
    %v1497 = vmul.f32 1.0, %v1496
    %v1498 = vmul.f32 %v1477, %v1375
    %v1499 = vmul.f32 %v1458, %v1478
    %v1500 = vadd.f32 %v1498, %v1499
    %v1501 = vtanh.pop %v1500
    %v1502 = vmul.f32 %v1497, %v1501
    %s1503 = sadd.s32 %s515, 5
    %v1504 = vstv %s1503
    %vm1505 = vcmp.lt.s32.totalorder %v1504, %v514
    %v1506 = vsel %vm1505, 1, 0
    %1507 = vset.pattern.permute.xlu0 0
    %1508 = vperm.xlu0 %1507, %v1506
    %v1509 = vpop.permute.xlu0 %1508
    %vm1510 = vcmp.eq.s32.totalorder %v1509, 1
    %v1511 = vsel %vm1510, %v1502, 0.0
    %s1512 = scalar_lea.vmem [#allocation13], 40
    %1513 = vst [vmem:[%s1512] sm:$0xff] %v1511
    %v1514 = vsel %vm1510, %v1502, %v1374
    %v1515 = vsel %vm1510, %v1500, %v1375
    %s1516 = smul.u32 6, 4
    %s1517 = smul.addr %s1516, 8
    %s1518 = scalar_lea.vmem [#allocation4], %s1517
    %v1519 = vld [vmem:[%s1518] sm:$0xff]
    %v1520 = vld [vmem:[%s1518 + $0x8] sm:$0xff]
    %v1521 = vld [vmem:[%s1518 + $0x10] sm:$0xff]
    %v1522 = vld [vmem:[%s1518 + $0x18] sm:$0xff]
    %v1523 = vpack.c.bf16 %v1514, %v1514
    %1524 = vmatpush.bf16.msra.mxu0 %v650
    %1525 = vmatpush.bf16.msra.mxu0 %v646
    %1526 = vmatpush.bf16.msra.mxu0 %v642
    %1527 = vmatpush.bf16.msra.mxu0 %v638
    %1528 = vmatpush.bf16.msra.mxu0 %v634
    %1529 = vmatpush.bf16.msra.mxu0 %v630
    %1530 = vmatpush.bf16.msra.mxu0 %v626
    %1531 = vmatpush.bf16.msra.mxu0 %v622
    %1532 = vmatmul.bf16.gmra.mxu0 %v1523
    %v1533 = vpop.f32.mrf.mxu0
    %v1534 = vadd.f32 0.0, %v1533
    %v1535 = vpop.f32.mrf.mxu0
    %1536 = vdwg.mxu0
    %1537 = vmatpush.bf16.msra.mxu0 %v651
    %1538 = vmatpush.bf16.msra.mxu0 %v647
    %1539 = vmatpush.bf16.msra.mxu0 %v643
    %1540 = vmatpush.bf16.msra.mxu0 %v639
    %1541 = vmatpush.bf16.msra.mxu0 %v635
    %1542 = vmatpush.bf16.msra.mxu0 %v631
    %1543 = vmatpush.bf16.msra.mxu0 %v627
    %1544 = vmatpush.bf16.msra.mxu0 %v623
    %1545 = vmatmul.bf16.gmra.mxu0 %v1523
    %v1546 = vpop.f32.mrf.mxu0
    %v1547 = vadd.f32 0.0, %v1546
    %v1548 = vpop.f32.mrf.mxu0
    %1549 = vdwg.mxu0
    %1550 = vmatpush.bf16.msra.mxu0 %v652
    %1551 = vmatpush.bf16.msra.mxu0 %v648
    %1552 = vmatpush.bf16.msra.mxu0 %v644
    %1553 = vmatpush.bf16.msra.mxu0 %v640
    %1554 = vmatpush.bf16.msra.mxu0 %v636
    %1555 = vmatpush.bf16.msra.mxu0 %v632
    %1556 = vmatpush.bf16.msra.mxu0 %v628
    %1557 = vmatpush.bf16.msra.mxu0 %v624
    %1558 = vmatmul.bf16.gmra.mxu0 %v1523
    %v1559 = vpop.f32.mrf.mxu0
    %v1560 = vadd.f32 0.0, %v1559
    %v1561 = vpop.f32.mrf.mxu0
    %1562 = vdwg.mxu0
    %1563 = vmatpush.bf16.msra.mxu0 %v653
    %1564 = vmatpush.bf16.msra.mxu0 %v649
    %1565 = vmatpush.bf16.msra.mxu0 %v645
    %1566 = vmatpush.bf16.msra.mxu0 %v641
    %1567 = vmatpush.bf16.msra.mxu0 %v637
    %1568 = vmatpush.bf16.msra.mxu0 %v633
    %1569 = vmatpush.bf16.msra.mxu0 %v629
    %1570 = vmatpush.bf16.msra.mxu0 %v625
    %1571 = vmatmul.bf16.gmra.mxu0 %v1523
    %v1572 = vpop.f32.mrf.mxu0
    %v1573 = vadd.f32 0.0, %v1572
    %v1574 = vpop.f32.mrf.mxu0
    %1575 = vdwg.mxu0
    %v1576 = vadd.f32 %v1519, %v1534
    %v1577 = vadd.f32 %v1520, %v1547
    %v1578 = vadd.f32 %v1521, %v1560
    %v1579 = vadd.f32 %v1522, %v1573
    %v1580 = vxor.u32 %v1576, 2147483648
    %v1581 = vmul.f32 %v1580, 1.442695
    %v1582 = vpow.pop %v1581
    %v1583 = vadd.f32 %v1582, 1.0
    %v1584 = vrcp.pop %v1583
    %v1585 = vmul.f32 %v1583, %v1584
    %v1586 = vsub.f32 1.0, %v1585
    %v1587 = vmul.f32 %v1584, %v1586
    %v1588 = vadd.f32 %v1584, %v1587
    %vm1589 = vweird.f32 %v1583
    %vm1590 = vweird.f32 %v1584
    %vm1591 = vmor %vm1589, %vm1590
    %v1592 = vsel %vm1591, %v1584, %v1588
    %v1593 = vand.u32 2147483647, %v1583
    %vm1594 = vcmp.eq.f32.partialorder %v1593, 8.507059e+37
    %v1595 = vand.u32 %v1583, 2147483648
    %v1596 = vor.u32 1.1754944e-38, %v1595
    %v1597 = vsel %vm1594, %v1596, %v1592
    %v1598 = vmul.f32 1.0, %v1597
    %v1599 = vxor.u32 %v1577, 2147483648
    %v1600 = vmul.f32 %v1599, 1.442695
    %v1601 = vpow.pop %v1600
    %v1602 = vadd.f32 %v1601, 1.0
    %v1603 = vrcp.pop %v1602
    %v1604 = vmul.f32 %v1602, %v1603
    %v1605 = vsub.f32 1.0, %v1604
    %v1606 = vmul.f32 %v1603, %v1605
    %v1607 = vadd.f32 %v1603, %v1606
    %vm1608 = vweird.f32 %v1602
    %vm1609 = vweird.f32 %v1603
    %vm1610 = vmor %vm1608, %vm1609
    %v1611 = vsel %vm1610, %v1603, %v1607
    %v1612 = vand.u32 2147483647, %v1602
    %vm1613 = vcmp.eq.f32.partialorder %v1612, 8.507059e+37
    %v1614 = vand.u32 %v1602, 2147483648
    %v1615 = vor.u32 1.1754944e-38, %v1614
    %v1616 = vsel %vm1613, %v1615, %v1611
    %v1617 = vmul.f32 1.0, %v1616
    %v1618 = vtanh.pop %v1578
    %v1619 = vxor.u32 %v1579, 2147483648
    %v1620 = vmul.f32 %v1619, 1.442695
    %v1621 = vpow.pop %v1620
    %v1622 = vadd.f32 %v1621, 1.0
    %v1623 = vrcp.pop %v1622
    %v1624 = vmul.f32 %v1622, %v1623
    %v1625 = vsub.f32 1.0, %v1624
    %v1626 = vmul.f32 %v1623, %v1625
    %v1627 = vadd.f32 %v1623, %v1626
    %vm1628 = vweird.f32 %v1622
    %vm1629 = vweird.f32 %v1623
    %vm1630 = vmor %vm1628, %vm1629
    %v1631 = vsel %vm1630, %v1623, %v1627
    %v1632 = vand.u32 2147483647, %v1622
    %vm1633 = vcmp.eq.f32.partialorder %v1632, 8.507059e+37
    %v1634 = vand.u32 %v1622, 2147483648
    %v1635 = vor.u32 1.1754944e-38, %v1634
    %v1636 = vsel %vm1633, %v1635, %v1631
    %v1637 = vmul.f32 1.0, %v1636
    %v1638 = vmul.f32 %v1617, %v1515
    %v1639 = vmul.f32 %v1598, %v1618
    %v1640 = vadd.f32 %v1638, %v1639
    %v1641 = vtanh.pop %v1640
    %v1642 = vmul.f32 %v1637, %v1641
    %s1643 = sadd.s32 %s515, 6
    %v1644 = vstv %s1643
    %vm1645 = vcmp.lt.s32.totalorder %v1644, %v514
    %v1646 = vsel %vm1645, 1, 0
    %1647 = vset.pattern.permute.xlu0 0
    %1648 = vperm.xlu0 %1647, %v1646
    %v1649 = vpop.permute.xlu0 %1648
    %vm1650 = vcmp.eq.s32.totalorder %v1649, 1
    %v1651 = vsel %vm1650, %v1642, 0.0
    %s1652 = scalar_lea.vmem [#allocation13], 48
    %1653 = vst [vmem:[%s1652] sm:$0xff] %v1651
    %v1654 = vsel %vm1650, %v1642, %v1514
    %v1655 = vsel %vm1650, %v1640, %v1515
    %s1656 = smul.u32 7, 4
    %s1657 = smul.addr %s1656, 8
    %s1658 = scalar_lea.vmem [#allocation4], %s1657
    %v1659 = vld [vmem:[%s1658] sm:$0xff]
    %v1660 = vld [vmem:[%s1658 + $0x8] sm:$0xff]
    %v1661 = vld [vmem:[%s1658 + $0x10] sm:$0xff]
    %v1662 = vld [vmem:[%s1658 + $0x18] sm:$0xff]
    %v1663 = vpack.c.bf16 %v1654, %v1654
    %1664 = vmatpush.bf16.msra.mxu0 %v650
    %1665 = vmatpush.bf16.msra.mxu0 %v646
    %1666 = vmatpush.bf16.msra.mxu0 %v642
    %1667 = vmatpush.bf16.msra.mxu0 %v638
    %1668 = vmatpush.bf16.msra.mxu0 %v634
    %1669 = vmatpush.bf16.msra.mxu0 %v630
    %1670 = vmatpush.bf16.msra.mxu0 %v626
    %1671 = vmatpush.bf16.msra.mxu0 %v622
    %1672 = vmatmul.bf16.gmra.mxu0 %v1663
    %v1673 = vpop.f32.mrf.mxu0
    %v1674 = vadd.f32 0.0, %v1673
    %v1675 = vpop.f32.mrf.mxu0
    %1676 = vdwg.mxu0
    %1677 = vmatpush.bf16.msra.mxu0 %v651
    %1678 = vmatpush.bf16.msra.mxu0 %v647
    %1679 = vmatpush.bf16.msra.mxu0 %v643
    %1680 = vmatpush.bf16.msra.mxu0 %v639
    %1681 = vmatpush.bf16.msra.mxu0 %v635
    %1682 = vmatpush.bf16.msra.mxu0 %v631
    %1683 = vmatpush.bf16.msra.mxu0 %v627
    %1684 = vmatpush.bf16.msra.mxu0 %v623
    %1685 = vmatmul.bf16.gmra.mxu0 %v1663
    %v1686 = vpop.f32.mrf.mxu0
    %v1687 = vadd.f32 0.0, %v1686
    %v1688 = vpop.f32.mrf.mxu0
    %1689 = vdwg.mxu0
    %1690 = vmatpush.bf16.msra.mxu0 %v652
    %1691 = vmatpush.bf16.msra.mxu0 %v648
    %1692 = vmatpush.bf16.msra.mxu0 %v644
    %1693 = vmatpush.bf16.msra.mxu0 %v640
    %1694 = vmatpush.bf16.msra.mxu0 %v636
    %1695 = vmatpush.bf16.msra.mxu0 %v632
    %1696 = vmatpush.bf16.msra.mxu0 %v628
    %1697 = vmatpush.bf16.msra.mxu0 %v624
    %1698 = vmatmul.bf16.gmra.mxu0 %v1663
    %v1699 = vpop.f32.mrf.mxu0
    %v1700 = vadd.f32 0.0, %v1699
    %v1701 = vpop.f32.mrf.mxu0
    %1702 = vdwg.mxu0
    %1703 = vmatpush.bf16.msra.mxu0 %v653
    %1704 = vmatpush.bf16.msra.mxu0 %v649
    %1705 = vmatpush.bf16.msra.mxu0 %v645
    %1706 = vmatpush.bf16.msra.mxu0 %v641
    %1707 = vmatpush.bf16.msra.mxu0 %v637
    %1708 = vmatpush.bf16.msra.mxu0 %v633
    %1709 = vmatpush.bf16.msra.mxu0 %v629
    %1710 = vmatpush.bf16.msra.mxu0 %v625
    %1711 = vmatmul.bf16.gmra.mxu0 %v1663
    %v1712 = vpop.f32.mrf.mxu0
    %v1713 = vadd.f32 0.0, %v1712
    %v1714 = vpop.f32.mrf.mxu0
    %1715 = vdwg.mxu0
    %v1716 = vadd.f32 %v1659, %v1674
    %v1717 = vadd.f32 %v1660, %v1687
    %v1718 = vadd.f32 %v1661, %v1700
    %v1719 = vadd.f32 %v1662, %v1713
    %v1720 = vxor.u32 %v1716, 2147483648
    %v1721 = vmul.f32 %v1720, 1.442695
    %v1722 = vpow.pop %v1721
    %v1723 = vadd.f32 %v1722, 1.0
    %v1724 = vrcp.pop %v1723
    %v1725 = vmul.f32 %v1723, %v1724
    %v1726 = vsub.f32 1.0, %v1725
    %v1727 = vmul.f32 %v1724, %v1726
    %v1728 = vadd.f32 %v1724, %v1727
    %vm1729 = vweird.f32 %v1723
    %vm1730 = vweird.f32 %v1724
    %vm1731 = vmor %vm1729, %vm1730
    %v1732 = vsel %vm1731, %v1724, %v1728
    %v1733 = vand.u32 2147483647, %v1723
    %vm1734 = vcmp.eq.f32.partialorder %v1733, 8.507059e+37
    %v1735 = vand.u32 %v1723, 2147483648
    %v1736 = vor.u32 1.1754944e-38, %v1735
    %v1737 = vsel %vm1734, %v1736, %v1732
    %v1738 = vmul.f32 1.0, %v1737
    %v1739 = vxor.u32 %v1717, 2147483648
    %v1740 = vmul.f32 %v1739, 1.442695
    %v1741 = vpow.pop %v1740
    %v1742 = vadd.f32 %v1741, 1.0
    %v1743 = vrcp.pop %v1742
    %v1744 = vmul.f32 %v1742, %v1743
    %v1745 = vsub.f32 1.0, %v1744
    %v1746 = vmul.f32 %v1743, %v1745
    %v1747 = vadd.f32 %v1743, %v1746
    %vm1748 = vweird.f32 %v1742
    %vm1749 = vweird.f32 %v1743
    %vm1750 = vmor %vm1748, %vm1749
    %v1751 = vsel %vm1750, %v1743, %v1747
    %v1752 = vand.u32 2147483647, %v1742
    %vm1753 = vcmp.eq.f32.partialorder %v1752, 8.507059e+37
    %v1754 = vand.u32 %v1742, 2147483648
    %v1755 = vor.u32 1.1754944e-38, %v1754
    %v1756 = vsel %vm1753, %v1755, %v1751
    %v1757 = vmul.f32 1.0, %v1756
    %v1758 = vtanh.pop %v1718
    %v1759 = vxor.u32 %v1719, 2147483648
    %v1760 = vmul.f32 %v1759, 1.442695
    %v1761 = vpow.pop %v1760
    %v1762 = vadd.f32 %v1761, 1.0
    %v1763 = vrcp.pop %v1762
    %v1764 = vmul.f32 %v1762, %v1763
    %v1765 = vsub.f32 1.0, %v1764
    %v1766 = vmul.f32 %v1763, %v1765
    %v1767 = vadd.f32 %v1763, %v1766
    %vm1768 = vweird.f32 %v1762
    %vm1769 = vweird.f32 %v1763
    %vm1770 = vmor %vm1768, %vm1769
    %v1771 = vsel %vm1770, %v1763, %v1767
    %v1772 = vand.u32 2147483647, %v1762
    %vm1773 = vcmp.eq.f32.partialorder %v1772, 8.507059e+37
    %v1774 = vand.u32 %v1762, 2147483648
    %v1775 = vor.u32 1.1754944e-38, %v1774
    %v1776 = vsel %vm1773, %v1775, %v1771
    %v1777 = vmul.f32 1.0, %v1776
    %v1778 = vmul.f32 %v1757, %v1655
    %v1779 = vmul.f32 %v1738, %v1758
    %v1780 = vadd.f32 %v1778, %v1779
    %v1781 = vtanh.pop %v1780
    %v1782 = vmul.f32 %v1777, %v1781
    %s1783 = sadd.s32 %s515, 7
    %v1784 = vstv %s1783
    %vm1785 = vcmp.lt.s32.totalorder %v1784, %v514
    %v1786 = vsel %vm1785, 1, 0
    %1787 = vset.pattern.permute.xlu0 0
    %1788 = vperm.xlu0 %1787, %v1786
    %v1789 = vpop.permute.xlu0 %1788
    %vm1790 = vcmp.eq.s32.totalorder %v1789, 1
    %v1791 = vsel %vm1790, %v1782, 0.0
    %s1792 = scalar_lea.vmem [#allocation13], 56
    %1793 = vst [vmem:[%s1792] sm:$0xff] %v1791
    %v1794 = vsel %vm1790, %v1782, %v1654
    %v1795 = vsel %vm1790, %v1780, %v1655
    %1796 = vst [vmem:[#allocation2] sm:$0xff] %v1794
    %1797 = vst [vmem:[#allocation3] sm:$0xff] %v1795
    %1798 = vst [vmem:[#allocation14] sm:$0xff] %v1794
    %1799 = vst [vmem:[#allocation16] sm:$0xff] %v1795
    // Predicated region
    $region50: #{tpu_custom_call.1} parent=1 // pred_check
      _
    $region51: #{tpu_custom_call.1} parent=1 // pred_check_branch
      %1801 = sbr.rel (0) target = $region53
    $region52: #{tpu_custom_call.1} parent=1 // pred_region
      %1803 = vsyncadd [#allocation7], 0
      %s1804 = sshll.u32 [#allocation13], 4
      %s1805 = int_to_ptr.vmem [resolvable:$true] %s1804
      %s1806 = sshll.u32 %s7, 4
      %s1807 = int_to_ptr.hbm [resolvable:$true] %s1806
      %1812 = dma.vmem_to_hbm [thread:$0]  %s1805, 1024, %s1807, [#allocation7], 128, 128, 8
    $region53: #{tpu_custom_call.1} parent=1 // pred_fallthru
      _
    // Predicated region
    $region54: #{tpu_custom_call.1} parent=1 // pred_check
      _
    $region55: #{tpu_custom_call.1} parent=1 // pred_check_branch
      %1814 = sbr.rel (0) target = $region57
    $region56: #{tpu_custom_call.1} parent=1 // pred_region
      %1816 = vsyncadd [#allocation15], 0
      %s1818 = sshll.u32 [#allocation14], 4
      %s1819 = int_to_ptr.vmem [resolvable:$true] %s1818
      %s1820 = sshll.u32 %s8, 4
      %s1821 = int_to_ptr.hbm [resolvable:$true] %s1820
      %1823 = dma.vmem_to_hbm [thread:$0]  %s1819, 128, %s1821, [#allocation15]
    $region57: #{tpu_custom_call.1} parent=1 // pred_fallthru
      _
    // Predicated region
    $region58: #{tpu_custom_call.1} parent=1 // pred_check
      _
    $region59: #{tpu_custom_call.1} parent=1 // pred_check_branch
      %1825 = sbr.rel (0) target = $region61
    $region60: #{tpu_custom_call.1} parent=1 // pred_region
      %1827 = vsyncadd [#allocation15], 0
      %s1829 = sshll.u32 [#allocation16], 4
      %s1830 = int_to_ptr.vmem [resolvable:$true] %s1829
      %s1831 = sshll.u32 %s9, 4
      %s1832 = int_to_ptr.hbm [resolvable:$true] %s1831
      %1834 = dma.vmem_to_hbm [thread:$0]  %s1830, 128, %s1832, [#allocation15]
    $region61: #{tpu_custom_call.1} parent=1 // pred_fallthru
      _
    // Predicated region
    $region62: #{tpu_custom_call.1} parent=1 // pred_check
      _
    $region63: #{tpu_custom_call.1} parent=1 // pred_check_branch
      %1836 = sbr.rel (0) target = $region65
    $region64: #{tpu_custom_call.1} parent=1 // pred_region
      %1838 = dma.done [#allocation7], 1024
    $region65: #{tpu_custom_call.1} parent=1 // pred_fallthru
      _
    // Predicated region
    $region66: #{tpu_custom_call.1} parent=1 // pred_check
      _
    $region67: #{tpu_custom_call.1} parent=1 // pred_check_branch
      %1840 = sbr.rel (0) target = $region69
    $region68: #{tpu_custom_call.1} parent=1 // pred_region
      %1842 = dma.done [#allocation15], 128
    $region69: #{tpu_custom_call.1} parent=1 // pred_fallthru
      _
    // Predicated region
    $region70: #{tpu_custom_call.1} parent=1 // pred_check
      _
    $region71: #{tpu_custom_call.1} parent=1 // pred_check_branch
      %1844 = sbr.rel (0) target = $region73
    $region72: #{tpu_custom_call.1} parent=1 // pred_region
      %1846 = dma.done [#allocation15], 128
    $region73: #{tpu_custom_call.1} parent=1 // pred_fallthru
      _
    %1847 = vsyncpa [#allocation6], 1
    %1848 = vsyncpa [#allocation9], 1
    %1849 = vsyncpa [#allocation12], 1
    %1850 = vsyncpa [#allocation7], 1
    %1851 = vsyncpa [#allocation15], 1

</llo_original>
